<compile_context>
chip_gen: v5e
topology: v5e:2x2
jax: 0.10.0
libtpu: 0.0.40
codegen_flags: <defaults>
</compile_context>

<pallas_src>
import functools

import jax
import jax.numpy as jnp
from jax.experimental import pallas as pl
from jax.experimental.pallas import tpu as pltpu

NUM_CLASSES = 6
CENTER_VARIANCE = 0.1
SIZE_VARIANCE = 0.2
LANE = 128


def _round_up(x, m):
    return ((x + m - 1) // m) * m


def _pick_tk(cin):
    """Cin (K) tile size: prefer >= 256 (v6e/v7x MXU K width), else 128."""
    if cin <= 256:
        return cin
    for tk in (256, 512, 128):
        if cin % tk == 0:
            return tk
    return cin


# ---------------------------------------------------------------------------
# Pallas kernel 1: fused (cls ++ reg) 3x3 "same" conv head for one image,
# K-tiled over Cin.
#
# x_ref   : (rows, tk)          bf16 -- Cin-slice of the padded, flattened NHWC
#                                        image ((H+3)*(W+2) rows, row-major)
# w_ref   : (9, tk, cout_p)     bf16 -- taps ordered (kh*3+kw), Cin-slice
# b_ref   : (1, cout_p)         f32
# o_ref   : (m_wide, cout_p)    bf16 -- "wide" output; cols W..W+1 are garbage
#                                        and get sliced off outside the kernel
# acc_ref : (m_wide, cout_p)    f32  -- VMEM scratch accumulator across k
# ---------------------------------------------------------------------------
def _conv3x3_fused_kernel(x_ref, w_ref, b_ref, o_ref, acc_ref, *,
                          m_wide, w_stride):
    k = pl.program_id(1)
    tap0 = jnp.dot(x_ref[0:m_wide, :], w_ref[0],
                   preferred_element_type=jnp.float32)

    @pl.when(k == 0)
    def _():
        acc_ref[...] = tap0 + b_ref[...]

    @pl.when(k != 0)
    def _():
        acc_ref[...] += tap0

    for idx in range(1, 9):
        kh, kw = divmod(idx, 3)
        off = kh * w_stride + kw          # contiguous row-shifted slice
        acc_ref[...] += jnp.dot(x_ref[off:off + m_wide, :], w_ref[idx],
                                preferred_element_type=jnp.float32)

    @pl.when(k == pl.num_programs(1) - 1)
    def _():
        o_ref[...] = acc_ref[...].astype(o_ref.dtype)


def conv3x3_fused(x_nchw, w_fused, b_fused, cout_cls, cout_reg):
    """Fused cls+reg nn.Conv2d(Cin, ., 3, stride=1, padding=1).

    Returns both heads' outputs NHWC-flattened to (N, H*W*Cout_x) in bf16,
    matching PyTorch's `.permute(0,2,3,1).reshape(N,-1)` layout.
    """
    N, Cin, H, W = x_nchw.shape
    cout_p = w_fused.shape[-1]
    w_stride = W + 2
    m_wide = H * w_stride                         # "wide" spatial rows / image
    rows = (H + 3) * (W + 2)                      # H pad (1,2) covers the last
                                                  # tap's +2-row slack
    tk = _pick_tk(Cin)
    n_k = Cin // tk

    # bf16 cast FIRST, then one transpose + one pad (single preprocessing pass)
    x = jnp.transpose(x_nchw.astype(jnp.bfloat16), (0, 2, 3, 1))   # NHWC bf16
    xp = jnp.pad(x, ((0, 0), (1, 2), (1, 1), (0, 0)))              # (N,H+3,W+2,C)
    x2d = xp.reshape(N, rows, Cin)

    # Explicit scoped-VMEM budget from the actual block set (double-buffered
    # inputs/outputs + f32 accumulator), clamped to stay under v7x's 64 MiB.
    x_blk = rows * tk * 2
    w_blk = 9 * tk * cout_p * 2
    b_blk = 8 * cout_p * 4
    o_blk = m_wide * cout_p * 2
    acc_blk = m_wide * cout_p * 4
    total = 2 * (x_blk + w_blk + b_blk + o_blk) + acc_blk
    vmem_limit = int(min(max(total * 3 // 2 + (4 << 20), 32 << 20), 64 << 20))

    kernel = functools.partial(_conv3x3_fused_kernel,
                               m_wide=m_wide, w_stride=w_stride)
    out = pl.pallas_call(
        kernel,
        out_shape=jax.ShapeDtypeStruct((N, m_wide, cout_p), jnp.bfloat16),
        grid=(N, n_k),
        in_specs=[
            pl.BlockSpec((None, rows, tk), lambda n, k: (n, 0, k)),
            pl.BlockSpec((9, tk, cout_p), lambda n, k: (0, k, 0)),
            pl.BlockSpec((1, cout_p), lambda n, k: (0, 0)),
        ],
        out_specs=pl.BlockSpec((None, m_wide, cout_p), lambda n, k: (n, 0, 0)),
        scratch_shapes=[pltpu.VMEM((m_wide, cout_p), jnp.float32)],
        compiler_params=pltpu.CompilerParams(
            dimension_semantics=("parallel", "arbitrary"),
            vmem_limit_bytes=vmem_limit),
    )(x2d, w_fused, b_fused)

    out = out.reshape(N, H, W + 2, cout_p)[:, :, :W, :]            # drop garbage
    cls_out = out[..., :cout_cls].reshape(N, -1)
    reg_out = out[..., cout_cls:cout_cls + cout_reg].reshape(N, -1)
    return cls_out, reg_out


# ---------------------------------------------------------------------------
# Pallas kernel 2: softmax + locations->center boxes->corner boxes decode.
# Layout is transposed so the prior axis is lane-dense; the whole padded prior
# axis is one block per image (no 128-lane step-overhead-bound tiling).
# ---------------------------------------------------------------------------
def _decode_kernel(logits_ref, loc_ref, prior_ref, scores_ref, boxes_ref):
    logits = logits_ref[...].astype(jnp.float32)   # (C, P)
    m = jnp.max(logits, axis=0, keepdims=True)
    e = jnp.exp(logits - m)
    denom = jnp.sum(e, axis=0, keepdims=True)
    # approx reciprocal (EUP): score rows sum to ~1, not exactly 1; fine for
    # detection scoring at the stated 1e-2 tolerance.
    scores_ref[...] = e * pl.reciprocal(denom, approx=True)

    loc = loc_ref[...].astype(jnp.float32)         # (4, P)
    pr = prior_ref[...]                            # (4, P) shared across batch
    prior_c = pr[0:2, :]
    prior_s = pr[2:4, :]
    centers = loc[0:2, :] * CENTER_VARIANCE * prior_s + prior_c
    sizes = jnp.exp(loc[2:4, :] * SIZE_VARIANCE) * prior_s
    boxes_ref[0:2, :] = centers - 0.5 * sizes      # direct sublane stores,
    boxes_ref[2:4, :] = centers + 0.5 * sizes      # no XLU concat


def decode(cls_logits, bbox_pred, priors):
    """cls_logits (N,P,C), bbox_pred (N,P,4), priors (P,4) -> scores, boxes."""
    N, P, C = cls_logits.shape
    p_pad = _round_up(P, LANE)

    # transpose at bf16 (conv outputs are already bf16); math is f32 in-kernel
    logits_t = jnp.transpose(cls_logits.astype(jnp.bfloat16), (0, 2, 1))
    loc_t = jnp.transpose(bbox_pred.astype(jnp.bfloat16), (0, 2, 1))
    priors_t = jnp.transpose(priors, (1, 0)).astype(jnp.float32)
    if p_pad != P:
        pad = p_pad - P
        logits_t = jnp.pad(logits_t, ((0, 0), (0, 0), (0, pad)))
        loc_t = jnp.pad(loc_t, ((0, 0), (0, 0), (0, pad)))
        priors_t = jnp.pad(priors_t, ((0, 0), (0, pad)))

    scores_t, boxes_t = pl.pallas_call(
        _decode_kernel,
        out_shape=(jax.ShapeDtypeStruct((N, C, p_pad), jnp.float32),
                   jax.ShapeDtypeStruct((N, 4, p_pad), jnp.float32)),
        grid=(N,),
        in_specs=[
            pl.BlockSpec((None, C, p_pad), lambda n: (n, 0, 0)),
            pl.BlockSpec((None, 4, p_pad), lambda n: (n, 0, 0)),
            # priors index_map ignores the batch index -> one tile reused for
            # every image (no jnp.tile / duplicated DMA).
            pl.BlockSpec((4, p_pad), lambda n: (0, 0)),
        ],
        out_specs=(
            pl.BlockSpec((None, C, p_pad), lambda n: (n, 0, 0)),
            pl.BlockSpec((None, 4, p_pad), lambda n: (n, 0, 0)),
        ),
        compiler_params=pltpu.CompilerParams(
            dimension_semantics=("parallel",)),
    )(logits_t, loc_t, priors_t)

    scores = jnp.transpose(scores_t[:, :, :P], (0, 2, 1))
    boxes = jnp.transpose(boxes_t[:, :, :P], (0, 2, 1))
    return scores, boxes


# ---------------------------------------------------------------------------
# SSDBoxHead (predictor + inference forward)
# ---------------------------------------------------------------------------
class SSDBoxHeadPallas:
    def __init__(self, feature_channels, boxes_per_location, num_classes, key):
        self.num_classes = num_classes
        self.boxes_per_location = boxes_per_location
        self.cls_params = []      # f32 OIHW (for the reference check)
        self.reg_params = []
        self.fused_params = []    # bf16 (9, Cin, Cout_p) + f32 (1, Cout_p) bias
        for cin, bpl in zip(feature_channels, boxes_per_location):
            key, k1, k2, k3, k4 = jax.random.split(key, 5)
            cout_cls = bpl * num_classes
            cout_reg = bpl * 4
            wc = 0.01 * jax.random.normal(k1, (cout_cls, cin, 3, 3), jnp.float32)
            bc = 0.10 * jax.random.normal(k3, (cout_cls,), jnp.float32)
            wr = 0.01 * jax.random.normal(k2, (cout_reg, cin, 3, 3), jnp.float32)
            br = 0.10 * jax.random.normal(k4, (cout_reg,), jnp.float32)
            self.cls_params.append((wc, bc))
            self.reg_params.append((wr, br))

            # Fuse cls ++ reg along Cout and pad only up to the next 128-lane
            # multiple (lane-dense stores, no over-padding past what's needed).
            wc_t = jnp.transpose(wc, (2, 3, 1, 0))           # (3,3,Cin,cls)
            wr_t = jnp.transpose(wr, (2, 3, 1, 0))           # (3,3,Cin,reg)
            w_cat = jnp.concatenate([wc_t, wr_t], axis=-1)   # (3,3,Cin,ct)
            ct = cout_cls + cout_reg
            cp = _round_up(ct, LANE)
            w_cat = jnp.pad(w_cat, ((0, 0), (0, 0), (0, 0), (0, cp - ct)))
            w_fused = w_cat.reshape(9, cin, cp).astype(jnp.bfloat16)
            b_fused = jnp.pad(jnp.concatenate([bc, br]),
                              (0, cp - ct)).reshape(1, cp).astype(jnp.float32)
            self.fused_params.append((w_fused, b_fused, cout_cls, cout_reg))
        self.priors = None
        self._prior_feat_sizes = None

    def _predictor(self, features):
        N = features[0].shape[0]
        cls_list, reg_list = [], []
        for feat, (wf, bf, cc, cr) in zip(features, self.fused_params):
            cls_out, reg_out = conv3x3_fused(feat, wf, bf, cc, cr)
            cls_list.append(cls_out)
            reg_list.append(reg_out)
        cls_logits = jnp.concatenate(cls_list, axis=1).reshape(
            N, -1, self.num_classes)
        bbox_pred = jnp.concatenate(reg_list, axis=1).reshape(N, -1, 4)
        return cls_logits, bbox_pred

    def _make_priors(self, feature_sizes):
        # Synthetic PriorBox: per-cell centers + bpl square anchors of growing size.
        all_priors = []
        for (H, W), bpl in zip(feature_sizes, self.boxes_per_location):
            ys, xs = jnp.meshgrid(jnp.arange(H, dtype=jnp.float32),
                                  jnp.arange(W, dtype=jnp.float32), indexing="ij")
            cx = (xs + 0.5) / W
            cy = (ys + 0.5) / H
            per_k = []
            for k in range(bpl):
                s = 0.1 + 0.15 * k
                per_k.append(jnp.stack(
                    [cx, cy, jnp.full_like(cx, s), jnp.full_like(cx, s)], axis=-1))
            cell = jnp.stack(per_k, axis=2)            # (H, W, bpl, 4)
            all_priors.append(cell.reshape(-1, 4))
        return jnp.clip(jnp.concatenate(all_priors, axis=0), 0.0, 1.0)

    def forward(self, features):
        """Inference path of SSDBoxHead.forward (self.training == False)."""
        cls_logits, bbox_pred = self._predictor(features)
        feat_sizes = tuple((f.shape[2], f.shape[3]) for f in features)
        if self.priors is None or self._prior_feat_sizes != feat_sizes:
            self.priors = self._make_priors(feat_sizes)
            self._prior_feat_sizes = feat_sizes
        scores, boxes = decode(cls_logits, bbox_pred, self.priors)
        # TODO(synk): PostProcessor (score thresholding + NMS) has data-dependent
        # output sizes and no clean Pallas equivalent; returning (scores, boxes).
        detections = (scores, boxes)
        return detections, {}


# ---------------------------------------------------------------------------
# Reference (plain JAX, f32) used only for a sanity check.
# ---------------------------------------------------------------------------
def _reference_forward(head, features):
    N = features[0].shape[0]
    cls_list, reg_list = [], []
    for feat, (wc, bc), (wr, br) in zip(features, head.cls_params,
                                        head.reg_params):
        def conv(x, w, b):
            y = jax.lax.conv_general_dilated(
                x, w, window_strides=(1, 1), padding="SAME",
                dimension_numbers=("NCHW", "OIHW", "NCHW"))
            return y + b[None, :, None, None]
        cls_list.append(jnp.transpose(conv(feat, wc, bc), (0, 2, 3, 1)).reshape(N, -1))
        reg_list.append(jnp.transpose(conv(feat, wr, br), (0, 2, 3, 1)).reshape(N, -1))
    cls_logits = jnp.concatenate(cls_list, axis=1).reshape(N, -1, head.num_classes)
    bbox_pred = jnp.concatenate(reg_list, axis=1).reshape(N, -1, 4)
    scores = jax.nn.softmax(cls_logits, axis=2)
    pr = head.priors
    centers = bbox_pred[..., :2] * CENTER_VARIANCE * pr[None, :, 2:] + pr[None, :, :2]
    sizes = jnp.exp(bbox_pred[..., 2:] * SIZE_VARIANCE) * pr[None, :, 2:]
    boxes = jnp.concatenate([centers - sizes / 2, centers + sizes / 2], axis=-1)
    return scores, boxes


if __name__ == "__main__":
    key = jax.random.PRNGKey(0)
    k_feat1, k_feat2, k_params = jax.random.split(key, 3)

    # Two small multi-scale feature maps (NCHW like PyTorch).
    features = [
        jax.random.normal(k_feat1, (2, 8, 8, 8), jnp.float32),   # N=2, C=8, 8x8
        jax.random.normal(k_feat2, (2, 8, 4, 4), jnp.float32),   # N=2, C=8, 4x4
    ]
    head = SSDBoxHeadPallas(feature_channels=[8, 8],
                            boxes_per_location=[4, 4],
                            num_classes=NUM_CLASSES,
                            key=k_params)

    (scores, boxes), loss_dict = head.forward(features)
    jax.block_until_ready((scores, boxes))

    # sanity check against plain-JAX reference (kernel matmuls / storage in bf16)
    ref_scores, ref_boxes = _reference_forward(head, features)
    assert scores.shape == (2, 320, NUM_CLASSES) and boxes.shape == (2, 320, 4)
    assert jnp.allclose(scores, ref_scores, atol=1e-2, rtol=1e-2)
    assert jnp.allclose(boxes, ref_boxes, atol=1e-2, rtol=1e-2)

    print("KERNEL_OK")
</pallas_src>

<mosaic_0001>
module attributes {stable_mosaic.version = 11 : i64} {
  func.func @_conv3x3_fused_kernel(%arg0: i32, %arg1: i32, %arg2: memref<1x110x8xbf16, #tpu.memory_space<vmem>>, %arg3: memref<9x8x128xbf16, #tpu.memory_space<vmem>>, %arg4: memref<1x128xf32, #tpu.memory_space<vmem>>, %arg5: memref<1x80x128xbf16, #tpu.memory_space<vmem>>, %arg6: memref<80x128xf32, #tpu.memory_space<vmem>>) attributes {dimension_semantics = [#tpu.dimension_semantics<parallel>, #tpu.dimension_semantics<arbitrary>], iteration_bounds = array<i64: 2, 1>, scalar_prefetch = 0 : i64, scratch_operands = 1 : i64, tpu.core_type = #tpu.core_type<tc>, window_params = [{transform_indices = @transform_0, window_bounds = array<i64: 1, 110, 8>}, {transform_indices = @transform_1, window_bounds = array<i64: 9, 8, 128>}, {pipeline_mode = #tpu.pipeline_mode<synchronous>, transform_indices = @transform_2, window_bounds = array<i64: 1, 128>}, {transform_indices = @transform_3, window_bounds = array<i64: 1, 80, 128>}]} {
    %c0 = arith.constant 0 : index
    %c0_0 = arith.constant 0 : index
    %c0_1 = arith.constant 0 : index
    %0 = vector.load %arg2[%c0, %c0_0, %c0_1] : memref<1x110x8xbf16, #tpu.memory_space<vmem>>, vector<1x80x8xbf16>
    %1 = vector.shape_cast %0 : vector<1x80x8xbf16> to vector<80x8xbf16>
    %c0_2 = arith.constant 0 : index
    %c0_3 = arith.constant 0 : index
    %c0_4 = arith.constant 0 : index
    %2 = vector.load %arg3[%c0_2, %c0_3, %c0_4] : memref<9x8x128xbf16, #tpu.memory_space<vmem>>, vector<1x8x128xbf16>
    %3 = vector.shape_cast %2 : vector<1x8x128xbf16> to vector<8x128xbf16>
    %cst = arith.constant dense<0.000000e+00> : vector<80x128xf32>
    %4 = tpu.matmul %1, %3, %cst {dimension_numbers = #tpu.dot_dimension_numbers<[1], [0], [0], [1], [0, 0, 1, 1], [], []>} : vector<80x8xbf16>, vector<8x128xbf16>, vector<80x128xf32> -> vector<80x128xf32>
    %c0_i32 = arith.constant 0 : i32
    %5 = arith.cmpi eq, %arg1, %c0_i32 : i32
    %6 = arith.extui %5 : i1 to i32
    %c0_i32_5 = arith.constant 0 : i32
    %7 = arith.cmpi ne, %6, %c0_i32_5 : i32
    scf.if %7 {
      %c0_84 = arith.constant 0 : index
      %c0_85 = arith.constant 0 : index
      %78 = vector.load %arg4[%c0_84, %c0_85] : memref<1x128xf32, #tpu.memory_space<vmem>>, vector<1x128xf32>
      %79 = vector.broadcast %78 : vector<1x128xf32> to vector<80x128xf32>
      %80 = arith.addf %4, %79 : vector<80x128xf32>
      %c0_86 = arith.constant 0 : index
      %c0_87 = arith.constant 0 : index
      %81 = vector.load %arg6[%c0_86, %c0_87] : memref<80x128xf32, #tpu.memory_space<vmem>>, vector<80x128xf32>
      tpu.vector_store %arg6[%c0_86, %c0_87], %80 {strides = array<i32>} : memref<80x128xf32, #tpu.memory_space<vmem>>, vector<80x128xf32>,
    } else {
    }
    %c0_i32_6 = arith.constant 0 : i32
    %8 = arith.cmpi ne, %arg1, %c0_i32_6 : i32
    %9 = arith.extui %8 : i1 to i32
    %c0_i32_7 = arith.constant 0 : i32
    %10 = arith.cmpi ne, %9, %c0_i32_7 : i32
    scf.if %10 {
      %c0_84 = arith.constant 0 : index
      %c0_85 = arith.constant 0 : index
      %78 = vector.load %arg6[%c0_84, %c0_85] : memref<80x128xf32, #tpu.memory_space<vmem>>, vector<80x128xf32>
      %79 = arith.addf %78, %4 : vector<80x128xf32>
      %c0_86 = arith.constant 0 : index
      %c0_87 = arith.constant 0 : index
      %80 = vector.load %arg6[%c0_86, %c0_87] : memref<80x128xf32, #tpu.memory_space<vmem>>, vector<80x128xf32>
      tpu.vector_store %arg6[%c0_86, %c0_87], %79 {strides = array<i32>} : memref<80x128xf32, #tpu.memory_space<vmem>>, vector<80x128xf32>,
    } else {
    }
    %c0_8 = arith.constant 0 : index
    %c0_9 = arith.constant 0 : index
    %11 = vector.load %arg6[%c0_8, %c0_9] : memref<80x128xf32, #tpu.memory_space<vmem>>, vector<80x128xf32>
    %c0_10 = arith.constant 0 : index
    %c1 = arith.constant 1 : index
    %c0_11 = arith.constant 0 : index
    %12 = vector.load %arg2[%c0_10, %c1, %c0_11] : memref<1x110x8xbf16, #tpu.memory_space<vmem>>, vector<1x80x8xbf16>
    %13 = vector.shape_cast %12 : vector<1x80x8xbf16> to vector<80x8xbf16>
    %c1_12 = arith.constant 1 : index
    %c0_13 = arith.constant 0 : index
    %c0_14 = arith.constant 0 : index
    %14 = vector.load %arg3[%c1_12, %c0_13, %c0_14] : memref<9x8x128xbf16, #tpu.memory_space<vmem>>, vector<1x8x128xbf16>
    %15 = vector.shape_cast %14 : vector<1x8x128xbf16> to vector<8x128xbf16>
    %cst_15 = arith.constant dense<0.000000e+00> : vector<80x128xf32>
    %16 = tpu.matmul %13, %15, %cst_15 {dimension_numbers = #tpu.dot_dimension_numbers<[1], [0], [0], [1], [0, 0, 1, 1], [], []>} : vector<80x8xbf16>, vector<8x128xbf16>, vector<80x128xf32> -> vector<80x128xf32>
    %17 = arith.addf %11, %16 : vector<80x128xf32>
    %c0_16 = arith.constant 0 : index
    %c0_17 = arith.constant 0 : index
    %18 = vector.load %arg6[%c0_16, %c0_17] : memref<80x128xf32, #tpu.memory_space<vmem>>, vector<80x128xf32>
    tpu.vector_store %arg6[%c0_16, %c0_17], %17 {strides = array<i32>} : memref<80x128xf32, #tpu.memory_space<vmem>>, vector<80x128xf32>,
    %c0_18 = arith.constant 0 : index
    %c0_19 = arith.constant 0 : index
    %19 = vector.load %arg6[%c0_18, %c0_19] : memref<80x128xf32, #tpu.memory_space<vmem>>, vector<80x128xf32>
    %c0_20 = arith.constant 0 : index
    %c2 = arith.constant 2 : index
    %c0_21 = arith.constant 0 : index
    %20 = vector.load %arg2[%c0_20, %c2, %c0_21] : memref<1x110x8xbf16, #tpu.memory_space<vmem>>, vector<1x80x8xbf16>
    %21 = vector.shape_cast %20 : vector<1x80x8xbf16> to vector<80x8xbf16>
    %c2_22 = arith.constant 2 : index
    %c0_23 = arith.constant 0 : index
    %c0_24 = arith.constant 0 : index
    %22 = vector.load %arg3[%c2_22, %c0_23, %c0_24] : memref<9x8x128xbf16, #tpu.memory_space<vmem>>, vector<1x8x128xbf16>
    %23 = vector.shape_cast %22 : vector<1x8x128xbf16> to vector<8x128xbf16>
    %cst_25 = arith.constant dense<0.000000e+00> : vector<80x128xf32>
    %24 = tpu.matmul %21, %23, %cst_25 {dimension_numbers = #tpu.dot_dimension_numbers<[1], [0], [0], [1], [0, 0, 1, 1], [], []>} : vector<80x8xbf16>, vector<8x128xbf16>, vector<80x128xf32> -> vector<80x128xf32>
    %25 = arith.addf %19, %24 : vector<80x128xf32>
    %c0_26 = arith.constant 0 : index
    %c0_27 = arith.constant 0 : index
    %26 = vector.load %arg6[%c0_26, %c0_27] : memref<80x128xf32, #tpu.memory_space<vmem>>, vector<80x128xf32>
    tpu.vector_store %arg6[%c0_26, %c0_27], %25 {strides = array<i32>} : memref<80x128xf32, #tpu.memory_space<vmem>>, vector<80x128xf32>,
    %c0_28 = arith.constant 0 : index
    %c0_29 = arith.constant 0 : index
    %27 = vector.load %arg6[%c0_28, %c0_29] : memref<80x128xf32, #tpu.memory_space<vmem>>, vector<80x128xf32>
    %c0_30 = arith.constant 0 : index
    %c10 = arith.constant 10 : index
    %c0_31 = arith.constant 0 : index
    %28 = vector.load %arg2[%c0_30, %c10, %c0_31] : memref<1x110x8xbf16, #tpu.memory_space<vmem>>, vector<1x80x8xbf16>
    %29 = vector.shape_cast %28 : vector<1x80x8xbf16> to vector<80x8xbf16>
    %c3 = arith.constant 3 : index
    %c0_32 = arith.constant 0 : index
    %c0_33 = arith.constant 0 : index
    %30 = vector.load %arg3[%c3, %c0_32, %c0_33] : memref<9x8x128xbf16, #tpu.memory_space<vmem>>, vector<1x8x128xbf16>
    %31 = vector.shape_cast %30 : vector<1x8x128xbf16> to vector<8x128xbf16>
    %cst_34 = arith.constant dense<0.000000e+00> : vector<80x128xf32>
    %32 = tpu.matmul %29, %31, %cst_34 {dimension_numbers = #tpu.dot_dimension_numbers<[1], [0], [0], [1], [0, 0, 1, 1], [], []>} : vector<80x8xbf16>, vector<8x128xbf16>, vector<80x128xf32> -> vector<80x128xf32>
    %33 = arith.addf %27, %32 : vector<80x128xf32>
    %c0_35 = arith.constant 0 : index
    %c0_36 = arith.constant 0 : index
    %34 = vector.load %arg6[%c0_35, %c0_36] : memref<80x128xf32, #tpu.memory_space<vmem>>, vector<80x128xf32>
    tpu.vector_store %arg6[%c0_35, %c0_36], %33 {strides = array<i32>} : memref<80x128xf32, #tpu.memory_space<vmem>>, vector<80x128xf32>,
    %c0_37 = arith.constant 0 : index
    %c0_38 = arith.constant 0 : index
    %35 = vector.load %arg6[%c0_37, %c0_38] : memref<80x128xf32, #tpu.memory_space<vmem>>, vector<80x128xf32>
    %c0_39 = arith.constant 0 : index
    %c11 = arith.constant 11 : index
    %c0_40 = arith.constant 0 : index
    %36 = vector.load %arg2[%c0_39, %c11, %c0_40] : memref<1x110x8xbf16, #tpu.memory_space<vmem>>, vector<1x80x8xbf16>
    %37 = vector.shape_cast %36 : vector<1x80x8xbf16> to vector<80x8xbf16>
    %c4 = arith.constant 4 : index
    %c0_41 = arith.constant 0 : index
    %c0_42 = arith.constant 0 : index
    %38 = vector.load %arg3[%c4, %c0_41, %c0_42] : memref<9x8x128xbf16, #tpu.memory_space<vmem>>, vector<1x8x128xbf16>
    %39 = vector.shape_cast %38 : vector<1x8x128xbf16> to vector<8x128xbf16>
    %cst_43 = arith.constant dense<0.000000e+00> : vector<80x128xf32>
    %40 = tpu.matmul %37, %39, %cst_43 {dimension_numbers = #tpu.dot_dimension_numbers<[1], [0], [0], [1], [0, 0, 1, 1], [], []>} : vector<80x8xbf16>, vector<8x128xbf16>, vector<80x128xf32> -> vector<80x128xf32>
    %41 = arith.addf %35, %40 : vector<80x128xf32>
    %c0_44 = arith.constant 0 : index
    %c0_45 = arith.constant 0 : index
    %42 = vector.load %arg6[%c0_44, %c0_45] : memref<80x128xf32, #tpu.memory_space<vmem>>, vector<80x128xf32>
    tpu.vector_store %arg6[%c0_44, %c0_45], %41 {strides = array<i32>} : memref<80x128xf32, #tpu.memory_space<vmem>>, vector<80x128xf32>,
    %c0_46 = arith.constant 0 : index
    %c0_47 = arith.constant 0 : index
    %43 = vector.load %arg6[%c0_46, %c0_47] : memref<80x128xf32, #tpu.memory_space<vmem>>, vector<80x128xf32>
    %c0_48 = arith.constant 0 : index
    %c12 = arith.constant 12 : index
    %c0_49 = arith.constant 0 : index
    %44 = vector.load %arg2[%c0_48, %c12, %c0_49] : memref<1x110x8xbf16, #tpu.memory_space<vmem>>, vector<1x80x8xbf16>
    %45 = vector.shape_cast %44 : vector<1x80x8xbf16> to vector<80x8xbf16>
    %c5 = arith.constant 5 : index
    %c0_50 = arith.constant 0 : index
    %c0_51 = arith.constant 0 : index
    %46 = vector.load %arg3[%c5, %c0_50, %c0_51] : memref<9x8x128xbf16, #tpu.memory_space<vmem>>, vector<1x8x128xbf16>
    %47 = vector.shape_cast %46 : vector<1x8x128xbf16> to vector<8x128xbf16>
    %cst_52 = arith.constant dense<0.000000e+00> : vector<80x128xf32>
    %48 = tpu.matmul %45, %47, %cst_52 {dimension_numbers = #tpu.dot_dimension_numbers<[1], [0], [0], [1], [0, 0, 1, 1], [], []>} : vector<80x8xbf16>, vector<8x128xbf16>, vector<80x128xf32> -> vector<80x128xf32>
    %49 = arith.addf %43, %48 : vector<80x128xf32>
    %c0_53 = arith.constant 0 : index
    %c0_54 = arith.constant 0 : index
    %50 = vector.load %arg6[%c0_53, %c0_54] : memref<80x128xf32, #tpu.memory_space<vmem>>, vector<80x128xf32>
    tpu.vector_store %arg6[%c0_53, %c0_54], %49 {strides = array<i32>} : memref<80x128xf32, #tpu.memory_space<vmem>>, vector<80x128xf32>,
    %c0_55 = arith.constant 0 : index
    %c0_56 = arith.constant 0 : index
    %51 = vector.load %arg6[%c0_55, %c0_56] : memref<80x128xf32, #tpu.memory_space<vmem>>, vector<80x128xf32>
    %c0_57 = arith.constant 0 : index
    %c20 = arith.constant 20 : index
    %c0_58 = arith.constant 0 : index
    %52 = vector.load %arg2[%c0_57, %c20, %c0_58] : memref<1x110x8xbf16, #tpu.memory_space<vmem>>, vector<1x80x8xbf16>
    %53 = vector.shape_cast %52 : vector<1x80x8xbf16> to vector<80x8xbf16>
    %c6 = arith.constant 6 : index
    %c0_59 = arith.constant 0 : index
    %c0_60 = arith.constant 0 : index
    %54 = vector.load %arg3[%c6, %c0_59, %c0_60] : memref<9x8x128xbf16, #tpu.memory_space<vmem>>, vector<1x8x128xbf16>
    %55 = vector.shape_cast %54 : vector<1x8x128xbf16> to vector<8x128xbf16>
    %cst_61 = arith.constant dense<0.000000e+00> : vector<80x128xf32>
    %56 = tpu.matmul %53, %55, %cst_61 {dimension_numbers = #tpu.dot_dimension_numbers<[1], [0], [0], [1], [0, 0, 1, 1], [], []>} : vector<80x8xbf16>, vector<8x128xbf16>, vector<80x128xf32> -> vector<80x128xf32>
    %57 = arith.addf %51, %56 : vector<80x128xf32>
    %c0_62 = arith.constant 0 : index
    %c0_63 = arith.constant 0 : index
    %58 = vector.load %arg6[%c0_62, %c0_63] : memref<80x128xf32, #tpu.memory_space<vmem>>, vector<80x128xf32>
    tpu.vector_store %arg6[%c0_62, %c0_63], %57 {strides = array<i32>} : memref<80x128xf32, #tpu.memory_space<vmem>>, vector<80x128xf32>,
    %c0_64 = arith.constant 0 : index
    %c0_65 = arith.constant 0 : index
    %59 = vector.load %arg6[%c0_64, %c0_65] : memref<80x128xf32, #tpu.memory_space<vmem>>, vector<80x128xf32>
    %c0_66 = arith.constant 0 : index
    %c21 = arith.constant 21 : index
    %c0_67 = arith.constant 0 : index
    %60 = vector.load %arg2[%c0_66, %c21, %c0_67] : memref<1x110x8xbf16, #tpu.memory_space<vmem>>, vector<1x80x8xbf16>
    %61 = vector.shape_cast %60 : vector<1x80x8xbf16> to vector<80x8xbf16>
    %c7 = arith.constant 7 : index
    %c0_68 = arith.constant 0 : index
    %c0_69 = arith.constant 0 : index
    %62 = vector.load %arg3[%c7, %c0_68, %c0_69] : memref<9x8x128xbf16, #tpu.memory_space<vmem>>, vector<1x8x128xbf16>
    %63 = vector.shape_cast %62 : vector<1x8x128xbf16> to vector<8x128xbf16>
    %cst_70 = arith.constant dense<0.000000e+00> : vector<80x128xf32>
    %64 = tpu.matmul %61, %63, %cst_70 {dimension_numbers = #tpu.dot_dimension_numbers<[1], [0], [0], [1], [0, 0, 1, 1], [], []>} : vector<80x8xbf16>, vector<8x128xbf16>, vector<80x128xf32> -> vector<80x128xf32>
    %65 = arith.addf %59, %64 : vector<80x128xf32>
    %c0_71 = arith.constant 0 : index
    %c0_72 = arith.constant 0 : index
    %66 = vector.load %arg6[%c0_71, %c0_72] : memref<80x128xf32, #tpu.memory_space<vmem>>, vector<80x128xf32>
    tpu.vector_store %arg6[%c0_71, %c0_72], %65 {strides = array<i32>} : memref<80x128xf32, #tpu.memory_space<vmem>>, vector<80x128xf32>,
    %c0_73 = arith.constant 0 : index
    %c0_74 = arith.constant 0 : index
    %67 = vector.load %arg6[%c0_73, %c0_74] : memref<80x128xf32, #tpu.memory_space<vmem>>, vector<80x128xf32>
    %c0_75 = arith.constant 0 : index
    %c22 = arith.constant 22 : index
    %c0_76 = arith.constant 0 : index
    %68 = vector.load %arg2[%c0_75, %c22, %c0_76] : memref<1x110x8xbf16, #tpu.memory_space<vmem>>, vector<1x80x8xbf16>
    %69 = vector.shape_cast %68 : vector<1x80x8xbf16> to vector<80x8xbf16>
    %c8 = arith.constant 8 : index
    %c0_77 = arith.constant 0 : index
    %c0_78 = arith.constant 0 : index
    %70 = vector.load %arg3[%c8, %c0_77, %c0_78] : memref<9x8x128xbf16, #tpu.memory_space<vmem>>, vector<1x8x128xbf16>
    %71 = vector.shape_cast %70 : vector<1x8x128xbf16> to vector<8x128xbf16>
    %cst_79 = arith.constant dense<0.000000e+00> : vector<80x128xf32>
    %72 = tpu.matmul %69, %71, %cst_79 {dimension_numbers = #tpu.dot_dimension_numbers<[1], [0], [0], [1], [0, 0, 1, 1], [], []>} : vector<80x8xbf16>, vector<8x128xbf16>, vector<80x128xf32> -> vector<80x128xf32>
    %73 = arith.addf %67, %72 : vector<80x128xf32>
    %c0_80 = arith.constant 0 : index
    %c0_81 = arith.constant 0 : index
    %74 = vector.load %arg6[%c0_80, %c0_81] : memref<80x128xf32, #tpu.memory_space<vmem>>, vector<80x128xf32>
    tpu.vector_store %arg6[%c0_80, %c0_81], %73 {strides = array<i32>} : memref<80x128xf32, #tpu.memory_space<vmem>>, vector<80x128xf32>,
    %c0_i32_82 = arith.constant 0 : i32
    %75 = arith.cmpi eq, %arg1, %c0_i32_82 : i32
    %76 = arith.extui %75 : i1 to i32
    %c0_i32_83 = arith.constant 0 : i32
    %77 = arith.cmpi ne, %76, %c0_i32_83 : i32
    scf.if %77 {
      %c0_84 = arith.constant 0 : index
      %c0_85 = arith.constant 0 : index
      %78 = vector.load %arg6[%c0_84, %c0_85] : memref<80x128xf32, #tpu.memory_space<vmem>>, vector<80x128xf32>
      %79 = arith.truncf %78 : vector<80x128xf32> to vector<80x128xbf16>
      %c0_86 = arith.constant 0 : index
      %c0_87 = arith.constant 0 : index
      %c0_88 = arith.constant 0 : index
      %80 = vector.load %arg5[%c0_86, %c0_87, %c0_88] : memref<1x80x128xbf16, #tpu.memory_space<vmem>>, vector<1x80x128xbf16>
      %81 = vector.shape_cast %80 : vector<1x80x128xbf16> to vector<80x128xbf16>
      %82 = vector.shape_cast %79 : vector<80x128xbf16> to vector<1x80x128xbf16>
      tpu.vector_store %arg5[%c0_86, %c0_87, %c0_88], %82 {strides = array<i32>} : memref<1x80x128xbf16, #tpu.memory_space<vmem>>, vector<1x80x128xbf16>,
    } else {
    }
    return
  }
  func.func @transform_0(%arg0: i32, %arg1: i32) -> (i32, i32, i32) {
    %c0_i32 = arith.constant 0 : i32
    %c0_i32_0 = arith.constant 0 : i32
    return %arg0, %c0_i32, %arg1 : i32, i32, i32
  }
  func.func @transform_1(%arg0: i32, %arg1: i32) -> (i32, i32, i32) {
    %c0_i32 = arith.constant 0 : i32
    %c0_i32_0 = arith.constant 0 : i32
    %c0_i32_1 = arith.constant 0 : i32
    return %c0_i32, %arg1, %c0_i32_0 : i32, i32, i32
  }
  func.func @transform_2(%arg0: i32, %arg1: i32) -> (i32, i32) {
    %c0_i32 = arith.constant 0 : i32
    %c0_i32_0 = arith.constant 0 : i32
    %c0_i32_1 = arith.constant 0 : i32
    return %c0_i32, %c0_i32_0 : i32, i32
  }
  func.func @transform_3(%arg0: i32, %arg1: i32) -> (i32, i32, i32) {
    %c0_i32 = arith.constant 0 : i32
    %c0_i32_0 = arith.constant 0 : i32
    %c0_i32_1 = arith.constant 0 : i32
    return %arg0, %c0_i32, %c0_i32_0 : i32, i32, i32
  }
}

</mosaic_0001>

<llo_original>
// kernel: tpu_custom_call.1
$region0: #{tpu_custom_call.1}
  #allocation0 [shape = 'u32[]', space=smem, size = 0x4, offset = 0x4, fixed_abs, tag = 'smem constant byte address 0x4 - core index']
  #allocation1 [shape = 'u32[72,128]{1,0:T(1,128)}', space=vmem, size = 0x9000, scoped, tag = 'internal scratch']
  #allocation2 [shape = 'f32[80,128]{1,0:T(8,128)}', space=vmem, size = 0xa000, scoped, tag = 'scratch operand']
  %s0 = inlined_call_operand.vmem [shape: bf16[2,110,8], index: 0, kind: input, shape index: {}]
  %s1 = inlined_call_operand.vmem [shape: bf16[9,8,128], index: 1, kind: input, shape index: {}]
  %s2 = inlined_call_operand.vmem [shape: f32[1,128], index: 2, kind: input, shape index: {}]
  %s3 = inlined_call_operand.hbm [shape: bf16[2,80,128], index: 3, kind: output, shape index: {}]
  %s4 = sld [smem:[#allocation0]]
  $region57: #{tpu_custom_call.1} parent=0
    _
  %s6 = ssub.s32 1, %s4
  %s7 = scalar_select 0, %s6, %s4
  $region1: #{tpu_custom_call.1} parent=0
    #allocation3 [shape = 'u8[40960]{0}', space=vmem, size = 0xa000, scoped, tag = 'output window, operand 0']
    #allocation4 [shape = 's32[2]{0}', space=sflag, size = 0x8, scoped, tag = 'scoped memory for tpu_custom_call.1']
    %8 = vsyncpa [#allocation4], 0
    %s9 = scalar_lea.sflag [#allocation4], 1
    %10 = vsyncpa %s9, 0
    loop: start=0, step=1, limit=4
    $region2: #{tpu_custom_call.1} parent=1 // loop_pre_header
      _
    $region3: #{tpu_custom_call.1} parent=1 // loop_header
      %s12 = sphi 0, %s16
      %p13 = scmp.ge.s32.totalorder %s12, 4
      %s19 = sphi 0, %s31
      %s20 = sphi 0, %s27
      %s21 = sphi 0, %s19
      %s22 = sphi 0, %s20
      %s23 = sphi 0, %s21
      %s24 = sphi 0, %s22
      %s36 = sphi 0, %s38
      %s39 = sphi 0, %s36
      %s40 = sphi 0, %s39
      %s56 = sphi 0, %s40
      %s62 = sphi 0, %s64
      %s65 = sphi 0, %s62
      %s66 = sphi 0, %s65
      %s82 = sphi 0, %s66
      %s86 = sphi 0, %s86
      %s88 = sphi 0, %s86
      %s89 = sphi 0, %s88
      %s103 = sphi 0, %s89
      %s109 = sphi 0, %s111
      %s112 = sphi 0, %s109
      %s113 = sphi 0, %s112
      %s129 = sphi 0, %s113
    $region4: #{tpu_custom_call.1} parent=1 // loop_header_branch
      %15 = sbr.rel (%p13) target = $region8
    $region5: #{tpu_custom_call.1} parent=1 // loop_body
      %s17 = ssub.s32 %s12, 1
      %s18 = ssub.s32 %s12, 2
      %s25 = sadd.s32 1, %s20
      %p26 = scmp.ge.s32.totalorder %s25, 1
      %s27 = scalar_select %p26, 0, %s25
      %s28 = sadd.s32 1, %s19
      %s29 = scalar_select %p26, %s28, %s19
      %p30 = scmp.ge.s32.totalorder %s29, 2
      %s31 = scalar_select %p30, 0, %s29
      %s32 = ssub.s32 %s19, %s31
      %s33 = ssub.s32 %s20, %s27
      %s34 = sor.u32 %s32, %s33
      %p35 = scmp.eq.s32.totalorder %s34, 0
      %s37 = sadd.s32 %s36, 1
      %s38 = scalar_select %p35, %s36, %s37
      %p41 = pneg %p35
      %p42 = scmp.eq.s32.totalorder %s12, 1
      %p43 = por %p41, %p42
      %p44 = scmp.ne.s32.totalorder %s36, %s39
      %p45 = scmp.eq.s32.totalorder %s12, 0
      %p46 = por %p44, %p45
      %p47 = scmp.ne.s32.totalorder %s36, %s39
      %p48 = scmp.eq.s32.totalorder %s17, 1
      %p49 = por %p47, %p48
      %p50 = scmp.ne.s32.totalorder %s39, %s40
      %p51 = scmp.eq.s32.totalorder %s17, 0
      %p52 = por %p50, %p51
      %p53 = scmp.ne.s32.totalorder %s39, %s40
      %p54 = scmp.eq.s32.totalorder %s18, 1
      %p55 = por %p53, %p54
      %p57 = scmp.ne.s32.totalorder %s40, %s56
      %p58 = scmp.eq.s32.totalorder %s18, 0
      %p59 = por %p57, %p58
      %s60 = ssub.s32 %s20, %s27
      %p61 = scmp.eq.s32.totalorder %s60, 0
      %s63 = sadd.s32 %s62, 1
      %s64 = scalar_select %p61, %s62, %s63
      %p67 = pneg %p61
      %p68 = scmp.eq.s32.totalorder %s12, 1
      %p69 = por %p67, %p68
      %p70 = scmp.ne.s32.totalorder %s62, %s65
      %p71 = scmp.eq.s32.totalorder %s12, 0
      %p72 = por %p70, %p71
      %p73 = scmp.ne.s32.totalorder %s62, %s65
      %p74 = scmp.eq.s32.totalorder %s17, 1
      %p75 = por %p73, %p74
      %p76 = scmp.ne.s32.totalorder %s65, %s66
      %p77 = scmp.eq.s32.totalorder %s17, 0
      %p78 = por %p76, %p77
      %p79 = scmp.ne.s32.totalorder %s65, %s66
      %p80 = scmp.eq.s32.totalorder %s18, 1
      %p81 = por %p79, %p80
      %p83 = scmp.ne.s32.totalorder %s66, %s82
      %p84 = scmp.eq.s32.totalorder %s18, 0
      %p85 = por %p83, %p84
      %s87 = sadd.s32 %s86, 1
      %p90 = scmp.eq.s32.totalorder %s12, 1
      %p91 = scmp.ne.s32.totalorder %s86, %s88
      %p92 = scmp.eq.s32.totalorder %s12, 0
      %p93 = por %p91, %p92
      %p94 = scmp.ne.s32.totalorder %s86, %s88
      %p95 = scmp.eq.s32.totalorder %s17, 1
      %p96 = por %p94, %p95
      %p97 = scmp.ne.s32.totalorder %s88, %s89
      %p98 = scmp.eq.s32.totalorder %s17, 0
      %p99 = por %p97, %p98
      %p100 = scmp.ne.s32.totalorder %s88, %s89
      %p101 = scmp.eq.s32.totalorder %s18, 1
      %p102 = por %p100, %p101
      %p104 = scmp.ne.s32.totalorder %s89, %s103
      %p105 = scmp.eq.s32.totalorder %s18, 0
      %p106 = por %p104, %p105
      %s107 = ssub.s32 %s19, %s31
      %p108 = scmp.eq.s32.totalorder %s107, 0
      %s110 = sadd.s32 %s109, 1
      %s111 = scalar_select %p108, %s109, %s110
      %p114 = pneg %p108
      %p115 = scmp.eq.s32.totalorder %s12, 1
      %p116 = por %p114, %p115
      %p117 = scmp.ne.s32.totalorder %s109, %s112
      %p118 = scmp.eq.s32.totalorder %s12, 0
      %p119 = por %p117, %p118
      %p120 = scmp.ne.s32.totalorder %s109, %s112
      %p121 = scmp.eq.s32.totalorder %s17, 1
      %p122 = por %p120, %p121
      %p123 = scmp.ne.s32.totalorder %s112, %s113
      %p124 = scmp.eq.s32.totalorder %s17, 0
      %p125 = por %p123, %p124
      %p126 = scmp.ne.s32.totalorder %s112, %s113
      %p127 = scmp.eq.s32.totalorder %s18, 1
      %p128 = por %p126, %p127
      %p130 = scmp.ne.s32.totalorder %s113, %s129
      %p131 = scmp.eq.s32.totalorder %s18, 0
      %p132 = por %p130, %p131
      %p133 = scmp.le.s32.totalorder 1, %s12
      %p134 = scmp.lt.s32.totalorder %s12, 3
      %p135 = pnand %p133, %p134
      %p136 = pneg %p135
      // Predicated region
      $region9: #{tpu_custom_call.1} parent=5 // pred_check
        _
      $region10: #{tpu_custom_call.1} parent=5 // pred_check_branch
        %138 = sbr.rel (%p135) target = $region12
      $region11: #{tpu_custom_call.1} parent=5 // pred_region
        %s139 = ssub.s32 %s12, 1
        // Predicated region
        $region13: #{tpu_custom_call.1} parent=11 // pred_check
          %p140 = pneg %p78
        $region14: #{tpu_custom_call.1} parent=11 // pred_check_branch
          %142 = sbr.rel (%p140) target = $region16
        $region15: #{tpu_custom_call.1} parent=11 // pred_region
          %p143 = scmp.lt.s32.totalorder %s22, 0
          %s144 = scalar_select %p143, %s22, 0
          %s145 = smul.addr %s144, 4
          %s146 = scalar_lea.vmem %s1, %s145
        $region16: #{tpu_custom_call.1} parent=11 // pred_fallthru
          _
        // Predicated region
        $region17: #{tpu_custom_call.1} parent=11 // pred_check
          %p147 = pneg %p99
        $region18: #{tpu_custom_call.1} parent=11 // pred_check_branch
          %149 = sbr.rel (%p147) target = $region20
        $region19: #{tpu_custom_call.1} parent=11 // pred_region
          _
        $region20: #{tpu_custom_call.1} parent=11 // pred_fallthru
          _
      $region12: #{tpu_custom_call.1} parent=5 // pred_fallthru
        _
      %p150 = scmp.lt.s32.totalorder %s12, 2
      // Predicated region
      $region21: #{tpu_custom_call.1} parent=5 // pred_check
        %p151 = pneg %p150
      $region22: #{tpu_custom_call.1} parent=5 // pred_check_branch
        %153 = sbr.rel (%p151) target = $region24
      $region23: #{tpu_custom_call.1} parent=5 // pred_region
        // Predicated region
        $region25: #{tpu_custom_call.1} parent=23 // pred_check
          %p154 = pneg %p46
        $region26: #{tpu_custom_call.1} parent=23 // pred_check_branch
          %156 = sbr.rel (%p154) target = $region28
        $region27: #{tpu_custom_call.1} parent=23 // pred_region
          %p157 = scmp.lt.s32.totalorder %s19, 1
          %s158 = scalar_select %p157, %s19, 1
          %p159 = scmp.lt.s32.totalorder %s20, 0
          %s160 = scalar_select %p159, %s20, 0
          %s161 = smul.addr %s158, 14
          %s162 = sadd.s32 %s160, %s161
          %s163 = smul.addr %s162, 4
          %s164 = scalar_lea.vmem %s0, %s163
        $region28: #{tpu_custom_call.1} parent=23 // pred_fallthru
          _
      $region24: #{tpu_custom_call.1} parent=5 // pred_fallthru
        _
      %p165 = scmp.le.s32.totalorder 1, %s12
      %p166 = scmp.lt.s32.totalorder %s12, 3
      %p167 = pnand %p165, %p166
      %p168 = pneg %p167
      // Predicated region
      $region29: #{tpu_custom_call.1} parent=5 // pred_check
        _
      $region30: #{tpu_custom_call.1} parent=5 // pred_check_branch
        %170 = sbr.rel (%p167) target = $region32
      $region31: #{tpu_custom_call.1} parent=5 // pred_region
        %s171 = ssub.s32 %s12, 1
        %p172 = scmp.lt.s32.totalorder %s21, 1
        %s173 = scalar_select %p172, %s21, 1
        %p174 = scmp.lt.s32.totalorder %s22, 0
        %s175 = scalar_select %p174, %s22, 0
        %s176 = smul.addr %s173, 14
        %s177 = sadd.s32 %s175, %s176
        %s178 = smul.addr %s177, 4
        %s179 = scalar_lea.vmem %s0, %s178
        %p180 = pneg %p52
        %p181 = pneg %p49
        %p182 = scmp.lt.s32.totalorder %s22, 0
        %s183 = scalar_select %p182, %s22, 0
        %s184 = smul.addr %s183, 4
        %s185 = scalar_lea.vmem %s1, %s184
        %p186 = pneg %p78
        %p187 = pneg %p75
        %p188 = pneg %p99
        %p189 = pneg %p96
        %p190 = pneg %p125
        %p191 = pneg %p122
        %s192 = sand.u32 %s112, 1
        %s193 = scalar_lea.sflag [#allocation4], %s192
        %s194 = sand.u32 %s112, 1
        %s195 = smul.addr %s194, 40
        %s196 = scalar_lea.vmem [#allocation3], %s195
        %p197 = scmp.lt.s32.totalorder %s21, 1
        %s198 = scalar_select %p197, %s21, 1
        %p199 = scmp.lt.s32.totalorder %s22, 0
        %s200 = scalar_select %p199, %s22, 0
        %s201 = smul.addr %s198, 14
        %s202 = sadd.s32 %s200, %s201
        %s203 = smul.addr %s202, 4
        %s204 = scalar_lea.vmem %s0, %s203
        %p205 = scmp.lt.s32.totalorder %s22, 0
        %s206 = scalar_select %p205, %s22, 0
        %s207 = smul.addr %s206, 4
        %s208 = scalar_lea.vmem %s1, %s207
        %v210 = vld [vmem:[%s204] sm:$0xf]
        %v211 = vld [vmem:[%s204 + $0x4] sm:$0xf]
        %v212 = vld [vmem:[%s204 + $0x8] sm:$0xf]
        %v213 = vld [vmem:[%s204 + $0xc] sm:$0xf]
        %v214 = vld [vmem:[%s204 + $0x10] sm:$0xf]
        %v215 = vld [vmem:[%s204 + $0x14] sm:$0xf]
        %v216 = vld [vmem:[%s204 + $0x18] sm:$0xf]
        %v217 = vld [vmem:[%s204 + $0x1c] sm:$0xf]
        %v218 = vld [vmem:[%s204 + $0x20] sm:$0xf]
        %v219 = vld [vmem:[%s204 + $0x24] sm:$0xf]
        %v220 = vld [vmem:[%s208] sm:$0xf]
        %v231 = vunpack.c.l.b16 %v210
        %v232 = vunpack.c.l.b16 %v211
        %v233 = vunpack.c.l.b16 %v212
        %v234 = vunpack.c.l.b16 %v213
        %v235 = vunpack.c.l.b16 %v214
        %v236 = vunpack.c.l.b16 %v215
        %v237 = vunpack.c.l.b16 %v216
        %v238 = vunpack.c.l.b16 %v217
        %v239 = vunpack.c.l.b16 %v218
        %v240 = vunpack.c.l.b16 %v219
        %v241 = vpack.c.b16 %v232, %v231
        %v242 = vpack.c.b16 %v234, %v233
        %v243 = vpack.c.b16 %v236, %v235
        %v244 = vpack.c.b16 %v238, %v237
        %v245 = vpack.c.b16 %v240, %v239
        %vm246 = vcmask 64512
        %v248 = vsel %vm246, %v241, 0
        %v251 = vsel %vm246, %v242, 0
        %v254 = vsel %vm246, %v243, 0
        %v257 = vsel %vm246, %v244, 0
        %v260 = vsel %vm246, %v245, 0
        %vm262 = vcmask 1043456
        %v264 = vsel %vm262, %v220, 0
        %266 = vmatpush.bf16.msra.mxu0 0
        %267 = vmatpush.bf16.msra.mxu0 0
        %268 = vmatpush.bf16.msra.mxu0 0
        %269 = vmatpush.bf16.msra.mxu0 0
        %270 = vmatpush.bf16.msra.mxu0 0
        %271 = vmatpush.bf16.msra.mxu0 0
        %272 = vmatpush.bf16.msra.mxu0 0
        %273 = vmatpush.bf16.msra.mxu0 %v264
        %274 = vmatmul.bf16.gmra.mxu0 %v248
        %v275 = vpop.f32.mrf.mxu0
        %v276 = vadd.f32 0.0, %v275
        %v277 = vpop.f32.mrf.mxu0
        %v278 = vadd.f32 0.0, %v277
        %279 = vmatmul.bf16.gmra.mxu0 %v251
        %v280 = vpop.f32.mrf.mxu0
        %v281 = vadd.f32 0.0, %v280
        %v282 = vpop.f32.mrf.mxu0
        %v283 = vadd.f32 0.0, %v282
        %284 = vmatmul.bf16.gmra.mxu0 %v254
        %v285 = vpop.f32.mrf.mxu0
        %v286 = vadd.f32 0.0, %v285
        %v287 = vpop.f32.mrf.mxu0
        %v288 = vadd.f32 0.0, %v287
        %289 = vmatmul.bf16.gmra.mxu0 %v257
        %v290 = vpop.f32.mrf.mxu0
        %v291 = vadd.f32 0.0, %v290
        %v292 = vpop.f32.mrf.mxu0
        %v293 = vadd.f32 0.0, %v292
        %294 = vmatmul.bf16.gmra.mxu0 %v260
        %v295 = vpop.f32.mrf.mxu0
        %v296 = vadd.f32 0.0, %v295
        %v297 = vpop.f32.mrf.mxu0
        %v298 = vadd.f32 0.0, %v297
        %299 = vdwg.mxu0
        %p300 = scmp.eq.s32.totalorder %s22, 0
        // Predicated region
        $region33: #{tpu_custom_call.1} parent=31 // pred_check
          %p301 = pneg %p300
        $region34: #{tpu_custom_call.1} parent=31 // pred_check_branch
          %303 = sbr.rel (%p301) target = $region36
        $region35: #{tpu_custom_call.1} parent=31 // pred_region
          %v304 = vld [vmem:[%s2] sm:$0x1]
          %v306 = vperm.slane %v304, 0
          %v308 = vadd.f32 %v276, %v306
          %v309 = vadd.f32 %v278, %v306
          %v310 = vadd.f32 %v281, %v306
          %v311 = vadd.f32 %v283, %v306
          %v312 = vadd.f32 %v286, %v306
          %v313 = vadd.f32 %v288, %v306
          %v314 = vadd.f32 %v291, %v306
          %v315 = vadd.f32 %v293, %v306
          %v316 = vadd.f32 %v296, %v306
          %v317 = vadd.f32 %v298, %v306
          %318 = vst [vmem:[#allocation2] sm:$0xff] %v308
          %319 = vst [vmem:[#allocation2 + $0x8] sm:$0xff] %v309
          %320 = vst [vmem:[#allocation2 + $0x10] sm:$0xff] %v310
          %321 = vst [vmem:[#allocation2 + $0x18] sm:$0xff] %v311
          %322 = vst [vmem:[#allocation2 + $0x20] sm:$0xff] %v312
          %323 = vst [vmem:[#allocation2 + $0x28] sm:$0xff] %v313
          %324 = vst [vmem:[#allocation2 + $0x30] sm:$0xff] %v314
          %325 = vst [vmem:[#allocation2 + $0x38] sm:$0xff] %v315
          %326 = vst [vmem:[#allocation2 + $0x40] sm:$0xff] %v316
          %327 = vst [vmem:[#allocation2 + $0x48] sm:$0xff] %v317
        $region36: #{tpu_custom_call.1} parent=31 // pred_fallthru
          _
        %p328 = scmp.ne.s32.totalorder %s22, 0
        // Predicated region
        $region37: #{tpu_custom_call.1} parent=31 // pred_check
          %p329 = pneg %p328
        $region38: #{tpu_custom_call.1} parent=31 // pred_check_branch
          %331 = sbr.rel (%p329) target = $region40
        $region39: #{tpu_custom_call.1} parent=31 // pred_region
          %v332 = vld [vmem:[#allocation2] sm:$0xff]
          %v333 = vld [vmem:[#allocation2 + $0x8] sm:$0xff]
          %v334 = vld [vmem:[#allocation2 + $0x10] sm:$0xff]
          %v335 = vld [vmem:[#allocation2 + $0x18] sm:$0xff]
          %v336 = vld [vmem:[#allocation2 + $0x20] sm:$0xff]
          %v337 = vld [vmem:[#allocation2 + $0x28] sm:$0xff]
          %v338 = vld [vmem:[#allocation2 + $0x30] sm:$0xff]
          %v339 = vld [vmem:[#allocation2 + $0x38] sm:$0xff]
          %v340 = vld [vmem:[#allocation2 + $0x40] sm:$0xff]
          %v341 = vld [vmem:[#allocation2 + $0x48] sm:$0xff]
          %v342 = vadd.f32 %v332, %v276
          %v343 = vadd.f32 %v333, %v278
          %v344 = vadd.f32 %v334, %v281
          %v345 = vadd.f32 %v335, %v283
          %v346 = vadd.f32 %v336, %v286
          %v347 = vadd.f32 %v337, %v288
          %v348 = vadd.f32 %v338, %v291
          %v349 = vadd.f32 %v339, %v293
          %v350 = vadd.f32 %v340, %v296
          %v351 = vadd.f32 %v341, %v298
          %352 = vst [vmem:[#allocation2] sm:$0xff] %v342
          %353 = vst [vmem:[#allocation2 + $0x8] sm:$0xff] %v343
          %354 = vst [vmem:[#allocation2 + $0x10] sm:$0xff] %v344
          %355 = vst [vmem:[#allocation2 + $0x18] sm:$0xff] %v345
          %356 = vst [vmem:[#allocation2 + $0x20] sm:$0xff] %v346
          %357 = vst [vmem:[#allocation2 + $0x28] sm:$0xff] %v347
          %358 = vst [vmem:[#allocation2 + $0x30] sm:$0xff] %v348
          %359 = vst [vmem:[#allocation2 + $0x38] sm:$0xff] %v349
          %360 = vst [vmem:[#allocation2 + $0x40] sm:$0xff] %v350
          %361 = vst [vmem:[#allocation2 + $0x48] sm:$0xff] %v351
        $region40: #{tpu_custom_call.1} parent=31 // pred_fallthru
          _
        %v362 = vld [vmem:[#allocation2] sm:$0xff]
        %v363 = vld [vmem:[#allocation2 + $0x8] sm:$0xff]
        %v364 = vld [vmem:[#allocation2 + $0x10] sm:$0xff]
        %v365 = vld [vmem:[#allocation2 + $0x18] sm:$0xff]
        %v366 = vld [vmem:[#allocation2 + $0x20] sm:$0xff]
        %v367 = vld [vmem:[#allocation2 + $0x28] sm:$0xff]
        %v368 = vld [vmem:[#allocation2 + $0x30] sm:$0xff]
        %v369 = vld [vmem:[#allocation2 + $0x38] sm:$0xff]
        %v370 = vld [vmem:[#allocation2 + $0x40] sm:$0xff]
        %v371 = vld [vmem:[#allocation2 + $0x48] sm:$0xff]
        %v372 = vld [vmem:[%s204] sm:$0xf]
        %v373 = vld [vmem:[%s204 + $0x4] sm:$0xf]
        %v374 = vld [vmem:[%s204 + $0x8] sm:$0xf]
        %v375 = vld [vmem:[%s204 + $0xc] sm:$0xf]
        %v376 = vld [vmem:[%s204 + $0x10] sm:$0xf]
        %v377 = vld [vmem:[%s204 + $0x14] sm:$0xf]
        %v378 = vld [vmem:[%s204 + $0x18] sm:$0xf]
        %v379 = vld [vmem:[%s204 + $0x1c] sm:$0xf]
        %v380 = vld [vmem:[%s204 + $0x20] sm:$0xf]
        %v381 = vld [vmem:[%s204 + $0x24] sm:$0xf]
        %v382 = vld [vmem:[%s204 + $0x28] sm:$0x1]
        %s383 = scalar_lea.vmem %s208, 4
        %v384 = vld [vmem:[%s383] sm:$0xf]
        %v396 = vunpack.c.l.b16 %v372
        %v397 = vunpack.c.l.b16 %v373
        %v398 = vunpack.c.l.b16 %v374
        %v399 = vunpack.c.l.b16 %v375
        %v400 = vunpack.c.l.b16 %v376
        %v401 = vunpack.c.l.b16 %v377
        %v402 = vunpack.c.l.b16 %v378
        %v403 = vunpack.c.l.b16 %v379
        %v404 = vunpack.c.l.b16 %v380
        %v405 = vunpack.c.l.b16 %v381
        %v406 = vunpack.c.l.b16 %v382
        %v407 = vpack.c.b16 %v397, %v396
        %v408 = vpack.c.b16 %v399, %v398
        %v409 = vpack.c.b16 %v401, %v400
        %v410 = vpack.c.b16 %v403, %v402
        %v411 = vpack.c.b16 %v405, %v404
        %v412 = vpack.c.b16 %v406, %v406
        %vm413 = vsmask.f32 7424
        %v415 = vshrl.u32 %v407, 16
        %v417 = vshll.u32 %v407, 16
        %v419 = vrot.slane %v417, 1
        %v420 = vor.u32 %v415, %v419
        %v422 = vshll.u32 %v408, 16
        %v424 = vrot.slane %v422, 1
        %v425 = vsel %vm413, %v420, %v424
        %v426 = vshrl.u32 %v408, 16
        %v428 = vor.u32 %v426, %v424
        %v430 = vshll.u32 %v409, 16
        %v432 = vrot.slane %v430, 1
        %v433 = vsel %vm413, %v428, %v432
        %v434 = vshrl.u32 %v409, 16
        %v436 = vor.u32 %v434, %v432
        %v438 = vshll.u32 %v410, 16
        %v440 = vrot.slane %v438, 1
        %v441 = vsel %vm413, %v436, %v440
        %v442 = vshrl.u32 %v410, 16
        %v444 = vor.u32 %v442, %v440
        %v446 = vshll.u32 %v411, 16
        %v448 = vrot.slane %v446, 1
        %v449 = vsel %vm413, %v444, %v448
        %v450 = vshrl.u32 %v411, 16
        %v452 = vor.u32 %v450, %v448
        %v454 = vshll.u32 %v412, 16
        %v456 = vrot.slane %v454, 1
        %v457 = vsel %vm413, %v452, %v456
        %v459 = vsel %vm246, %v425, 0
        %v462 = vsel %vm246, %v433, 0
        %v465 = vsel %vm246, %v441, 0
        %v468 = vsel %vm246, %v449, 0
        %v471 = vsel %vm246, %v457, 0
        %v474 = vsel %vm262, %v384, 0
        %476 = vmatpush.bf16.msra.mxu0 0
        %477 = vmatpush.bf16.msra.mxu0 0
        %478 = vmatpush.bf16.msra.mxu0 0
        %479 = vmatpush.bf16.msra.mxu0 0
        %480 = vmatpush.bf16.msra.mxu0 0
        %481 = vmatpush.bf16.msra.mxu0 0
        %482 = vmatpush.bf16.msra.mxu0 0
        %483 = vmatpush.bf16.msra.mxu0 %v474
        %484 = vmatmul.bf16.gmra.mxu0 %v459
        %v485 = vpop.f32.mrf.mxu0
        %v486 = vadd.f32 0.0, %v485
        %v487 = vpop.f32.mrf.mxu0
        %v488 = vadd.f32 0.0, %v487
        %489 = vmatmul.bf16.gmra.mxu0 %v462
        %v490 = vpop.f32.mrf.mxu0
        %v491 = vadd.f32 0.0, %v490
        %v492 = vpop.f32.mrf.mxu0
        %v493 = vadd.f32 0.0, %v492
        %494 = vmatmul.bf16.gmra.mxu0 %v465
        %v495 = vpop.f32.mrf.mxu0
        %v496 = vadd.f32 0.0, %v495
        %v497 = vpop.f32.mrf.mxu0
        %v498 = vadd.f32 0.0, %v497
        %499 = vmatmul.bf16.gmra.mxu0 %v468
        %v500 = vpop.f32.mrf.mxu0
        %v501 = vadd.f32 0.0, %v500
        %v502 = vpop.f32.mrf.mxu0
        %v503 = vadd.f32 0.0, %v502
        %504 = vmatmul.bf16.gmra.mxu0 %v471
        %v505 = vpop.f32.mrf.mxu0
        %v506 = vadd.f32 0.0, %v505
        %v507 = vpop.f32.mrf.mxu0
        %v508 = vadd.f32 0.0, %v507
        %509 = vdwg.mxu0
        %v510 = vadd.f32 %v362, %v486
        %v511 = vadd.f32 %v363, %v488
        %v512 = vadd.f32 %v364, %v491
        %v513 = vadd.f32 %v365, %v493
        %v514 = vadd.f32 %v366, %v496
        %v515 = vadd.f32 %v367, %v498
        %v516 = vadd.f32 %v368, %v501
        %v517 = vadd.f32 %v369, %v503
        %v518 = vadd.f32 %v370, %v506
        %v519 = vadd.f32 %v371, %v508
        %520 = vst [vmem:[#allocation2] sm:$0xff] %v510
        %521 = vst [vmem:[#allocation2 + $0x8] sm:$0xff] %v511
        %522 = vst [vmem:[#allocation2 + $0x10] sm:$0xff] %v512
        %523 = vst [vmem:[#allocation2 + $0x18] sm:$0xff] %v513
        %524 = vst [vmem:[#allocation2 + $0x20] sm:$0xff] %v514
        %525 = vst [vmem:[#allocation2 + $0x28] sm:$0xff] %v515
        %526 = vst [vmem:[#allocation2 + $0x30] sm:$0xff] %v516
        %527 = vst [vmem:[#allocation2 + $0x38] sm:$0xff] %v517
        %528 = vst [vmem:[#allocation2 + $0x40] sm:$0xff] %v518
        %529 = vst [vmem:[#allocation2 + $0x48] sm:$0xff] %v519
        %v530 = vld [vmem:[#allocation2] sm:$0xff]
        %v531 = vld [vmem:[#allocation2 + $0x8] sm:$0xff]
        %v532 = vld [vmem:[#allocation2 + $0x10] sm:$0xff]
        %v533 = vld [vmem:[#allocation2 + $0x18] sm:$0xff]
        %v534 = vld [vmem:[#allocation2 + $0x20] sm:$0xff]
        %v535 = vld [vmem:[#allocation2 + $0x28] sm:$0xff]
        %v536 = vld [vmem:[#allocation2 + $0x30] sm:$0xff]
        %v537 = vld [vmem:[#allocation2 + $0x38] sm:$0xff]
        %v538 = vld [vmem:[#allocation2 + $0x40] sm:$0xff]
        %v539 = vld [vmem:[#allocation2 + $0x48] sm:$0xff]
        %v540 = vld [vmem:[%s204] sm:$0xe]
        %v541 = vld [vmem:[%s204 + $0x4] sm:$0xf]
        %v542 = vld [vmem:[%s204 + $0x8] sm:$0xf]
        %v543 = vld [vmem:[%s204 + $0xc] sm:$0xf]
        %v544 = vld [vmem:[%s204 + $0x10] sm:$0xf]
        %v545 = vld [vmem:[%s204 + $0x14] sm:$0xf]
        %v546 = vld [vmem:[%s204 + $0x18] sm:$0xf]
        %v547 = vld [vmem:[%s204 + $0x1c] sm:$0xf]
        %v548 = vld [vmem:[%s204 + $0x20] sm:$0xf]
        %v549 = vld [vmem:[%s204 + $0x24] sm:$0xf]
        %v550 = vld [vmem:[%s204 + $0x28] sm:$0x1]
        %s551 = scalar_lea.vmem %s208, 8
        %v552 = vld [vmem:[%s551] sm:$0xf]
        %v564 = vunpack.c.l.b16 %v540
        %v565 = vunpack.c.l.b16 %v541
        %v566 = vunpack.c.l.b16 %v542
        %v567 = vunpack.c.l.b16 %v543
        %v568 = vunpack.c.l.b16 %v544
        %v569 = vunpack.c.l.b16 %v545
        %v570 = vunpack.c.l.b16 %v546
        %v571 = vunpack.c.l.b16 %v547
        %v572 = vunpack.c.l.b16 %v548
        %v573 = vunpack.c.l.b16 %v549
        %v574 = vunpack.c.l.b16 %v550
        %v575 = vpack.c.b16 %v565, %v564
        %v576 = vpack.c.b16 %v567, %v566
        %v577 = vpack.c.b16 %v569, %v568
        %v578 = vpack.c.b16 %v571, %v570
        %v579 = vpack.c.b16 %v573, %v572
        %v580 = vpack.c.b16 %v574, %v574
        %vm581 = vcmask 1046528
        %v582 = vrot.slane %v575, 1
        %v583 = vrot.slane %v576, 1
        %v584 = vsel %vm581, %v582, %v583
        %v585 = vrot.slane %v577, 1
        %v586 = vsel %vm581, %v583, %v585
        %v587 = vrot.slane %v578, 1
        %v588 = vsel %vm581, %v585, %v587
        %v589 = vrot.slane %v579, 1
        %v590 = vsel %vm581, %v587, %v589
        %v591 = vrot.slane %v580, 1
        %v592 = vsel %vm581, %v589, %v591
        %v594 = vsel %vm246, %v584, 0
        %v597 = vsel %vm246, %v586, 0
        %v600 = vsel %vm246, %v588, 0
        %v603 = vsel %vm246, %v590, 0
        %v606 = vsel %vm246, %v592, 0
        %v609 = vsel %vm262, %v552, 0
        %611 = vmatpush.bf16.msra.mxu0 0
        %612 = vmatpush.bf16.msra.mxu0 0
        %613 = vmatpush.bf16.msra.mxu0 0
        %614 = vmatpush.bf16.msra.mxu0 0
        %615 = vmatpush.bf16.msra.mxu0 0
        %616 = vmatpush.bf16.msra.mxu0 0
        %617 = vmatpush.bf16.msra.mxu0 0
        %618 = vmatpush.bf16.msra.mxu0 %v609
        %619 = vmatmul.bf16.gmra.mxu0 %v594
        %v620 = vpop.f32.mrf.mxu0
        %v621 = vadd.f32 0.0, %v620
        %v622 = vpop.f32.mrf.mxu0
        %v623 = vadd.f32 0.0, %v622
        %624 = vmatmul.bf16.gmra.mxu0 %v597
        %v625 = vpop.f32.mrf.mxu0
        %v626 = vadd.f32 0.0, %v625
        %v627 = vpop.f32.mrf.mxu0
        %v628 = vadd.f32 0.0, %v627
        %629 = vmatmul.bf16.gmra.mxu0 %v600
        %v630 = vpop.f32.mrf.mxu0
        %v631 = vadd.f32 0.0, %v630
        %v632 = vpop.f32.mrf.mxu0
        %v633 = vadd.f32 0.0, %v632
        %634 = vmatmul.bf16.gmra.mxu0 %v603
        %v635 = vpop.f32.mrf.mxu0
        %v636 = vadd.f32 0.0, %v635
        %v637 = vpop.f32.mrf.mxu0
        %v638 = vadd.f32 0.0, %v637
        %639 = vmatmul.bf16.gmra.mxu0 %v606
        %v640 = vpop.f32.mrf.mxu0
        %v641 = vadd.f32 0.0, %v640
        %v642 = vpop.f32.mrf.mxu0
        %v643 = vadd.f32 0.0, %v642
        %644 = vdwg.mxu0
        %v645 = vadd.f32 %v530, %v621
        %v646 = vadd.f32 %v531, %v623
        %v647 = vadd.f32 %v532, %v626
        %v648 = vadd.f32 %v533, %v628
        %v649 = vadd.f32 %v534, %v631
        %v650 = vadd.f32 %v535, %v633
        %v651 = vadd.f32 %v536, %v636
        %v652 = vadd.f32 %v537, %v638
        %v653 = vadd.f32 %v538, %v641
        %v654 = vadd.f32 %v539, %v643
        %655 = vst [vmem:[#allocation2] sm:$0xff] %v645
        %656 = vst [vmem:[#allocation2 + $0x8] sm:$0xff] %v646
        %657 = vst [vmem:[#allocation2 + $0x10] sm:$0xff] %v647
        %658 = vst [vmem:[#allocation2 + $0x18] sm:$0xff] %v648
        %659 = vst [vmem:[#allocation2 + $0x20] sm:$0xff] %v649
        %660 = vst [vmem:[#allocation2 + $0x28] sm:$0xff] %v650
        %661 = vst [vmem:[#allocation2 + $0x30] sm:$0xff] %v651
        %662 = vst [vmem:[#allocation2 + $0x38] sm:$0xff] %v652
        %663 = vst [vmem:[#allocation2 + $0x40] sm:$0xff] %v653
        %664 = vst [vmem:[#allocation2 + $0x48] sm:$0xff] %v654
        %v665 = vld [vmem:[#allocation2] sm:$0xff]
        %v666 = vld [vmem:[#allocation2 + $0x8] sm:$0xff]
        %v667 = vld [vmem:[#allocation2 + $0x10] sm:$0xff]
        %v668 = vld [vmem:[#allocation2 + $0x18] sm:$0xff]
        %v669 = vld [vmem:[#allocation2 + $0x20] sm:$0xff]
        %v670 = vld [vmem:[#allocation2 + $0x28] sm:$0xff]
        %v671 = vld [vmem:[#allocation2 + $0x30] sm:$0xff]
        %v672 = vld [vmem:[#allocation2 + $0x38] sm:$0xff]
        %v673 = vld [vmem:[#allocation2 + $0x40] sm:$0xff]
        %v674 = vld [vmem:[#allocation2 + $0x48] sm:$0xff]
        %v675 = vld [vmem:[%s204 + $0x4] sm:$0xe]
        %v676 = vld [vmem:[%s204 + $0x8] sm:$0xf]
        %v677 = vld [vmem:[%s204 + $0xc] sm:$0xf]
        %v678 = vld [vmem:[%s204 + $0x10] sm:$0xf]
        %v679 = vld [vmem:[%s204 + $0x14] sm:$0xf]
        %v680 = vld [vmem:[%s204 + $0x18] sm:$0xf]
        %v681 = vld [vmem:[%s204 + $0x1c] sm:$0xf]
        %v682 = vld [vmem:[%s204 + $0x20] sm:$0xf]
        %v683 = vld [vmem:[%s204 + $0x24] sm:$0xf]
        %v684 = vld [vmem:[%s204 + $0x28] sm:$0xf]
        %v685 = vld [vmem:[%s204 + $0x2c] sm:$0x1]
        %s686 = scalar_lea.vmem %s208, 12
        %v687 = vld [vmem:[%s686] sm:$0xf]
        %v699 = vunpack.c.l.b16 %v675
        %v700 = vunpack.c.l.b16 %v676
        %v701 = vunpack.c.l.b16 %v677
        %v702 = vunpack.c.l.b16 %v678
        %v703 = vunpack.c.l.b16 %v679
        %v704 = vunpack.c.l.b16 %v680
        %v705 = vunpack.c.l.b16 %v681
        %v706 = vunpack.c.l.b16 %v682
        %v707 = vunpack.c.l.b16 %v683
        %v708 = vunpack.c.l.b16 %v684
        %v709 = vunpack.c.l.b16 %v685
        %v710 = vpack.c.b16 %v700, %v699
        %v711 = vpack.c.b16 %v702, %v701
        %v712 = vpack.c.b16 %v704, %v703
        %v713 = vpack.c.b16 %v706, %v705
        %v714 = vpack.c.b16 %v708, %v707
        %v715 = vpack.c.b16 %v709, %v709
        %v716 = vrot.slane %v710, 1
        %v717 = vrot.slane %v711, 1
        %v718 = vsel %vm581, %v716, %v717
        %v719 = vrot.slane %v712, 1
        %v720 = vsel %vm581, %v717, %v719
        %v721 = vrot.slane %v713, 1
        %v722 = vsel %vm581, %v719, %v721
        %v723 = vrot.slane %v714, 1
        %v724 = vsel %vm581, %v721, %v723
        %v725 = vrot.slane %v715, 1
        %v726 = vsel %vm581, %v723, %v725
        %v728 = vsel %vm246, %v718, 0
        %v731 = vsel %vm246, %v720, 0
        %v734 = vsel %vm246, %v722, 0
        %v737 = vsel %vm246, %v724, 0
        %v740 = vsel %vm246, %v726, 0
        %v743 = vsel %vm262, %v687, 0
        %745 = vmatpush.bf16.msra.mxu0 0
        %746 = vmatpush.bf16.msra.mxu0 0
        %747 = vmatpush.bf16.msra.mxu0 0
        %748 = vmatpush.bf16.msra.mxu0 0
        %749 = vmatpush.bf16.msra.mxu0 0
        %750 = vmatpush.bf16.msra.mxu0 0
        %751 = vmatpush.bf16.msra.mxu0 0
        %752 = vmatpush.bf16.msra.mxu0 %v743
        %753 = vmatmul.bf16.gmra.mxu0 %v728
        %v754 = vpop.f32.mrf.mxu0
        %v755 = vadd.f32 0.0, %v754
        %v756 = vpop.f32.mrf.mxu0
        %v757 = vadd.f32 0.0, %v756
        %758 = vmatmul.bf16.gmra.mxu0 %v731
        %v759 = vpop.f32.mrf.mxu0
        %v760 = vadd.f32 0.0, %v759
        %v761 = vpop.f32.mrf.mxu0
        %v762 = vadd.f32 0.0, %v761
        %763 = vmatmul.bf16.gmra.mxu0 %v734
        %v764 = vpop.f32.mrf.mxu0
        %v765 = vadd.f32 0.0, %v764
        %v766 = vpop.f32.mrf.mxu0
        %v767 = vadd.f32 0.0, %v766
        %768 = vmatmul.bf16.gmra.mxu0 %v737
        %v769 = vpop.f32.mrf.mxu0
        %v770 = vadd.f32 0.0, %v769
        %v771 = vpop.f32.mrf.mxu0
        %v772 = vadd.f32 0.0, %v771
        %773 = vmatmul.bf16.gmra.mxu0 %v740
        %v774 = vpop.f32.mrf.mxu0
        %v775 = vadd.f32 0.0, %v774
        %v776 = vpop.f32.mrf.mxu0
        %v777 = vadd.f32 0.0, %v776
        %778 = vdwg.mxu0
        %v779 = vadd.f32 %v665, %v755
        %v780 = vadd.f32 %v666, %v757
        %v781 = vadd.f32 %v667, %v760
        %v782 = vadd.f32 %v668, %v762
        %v783 = vadd.f32 %v669, %v765
        %v784 = vadd.f32 %v670, %v767
        %v785 = vadd.f32 %v671, %v770
        %v786 = vadd.f32 %v672, %v772
        %v787 = vadd.f32 %v673, %v775
        %v788 = vadd.f32 %v674, %v777
        %789 = vst [vmem:[#allocation2] sm:$0xff] %v779
        %790 = vst [vmem:[#allocation2 + $0x8] sm:$0xff] %v780
        %791 = vst [vmem:[#allocation2 + $0x10] sm:$0xff] %v781
        %792 = vst [vmem:[#allocation2 + $0x18] sm:$0xff] %v782
        %793 = vst [vmem:[#allocation2 + $0x20] sm:$0xff] %v783
        %794 = vst [vmem:[#allocation2 + $0x28] sm:$0xff] %v784
        %795 = vst [vmem:[#allocation2 + $0x30] sm:$0xff] %v785
        %796 = vst [vmem:[#allocation2 + $0x38] sm:$0xff] %v786
        %797 = vst [vmem:[#allocation2 + $0x40] sm:$0xff] %v787
        %798 = vst [vmem:[#allocation2 + $0x48] sm:$0xff] %v788
        %v799 = vld [vmem:[#allocation2] sm:$0xff]
        %v800 = vld [vmem:[#allocation2 + $0x8] sm:$0xff]
        %v801 = vld [vmem:[#allocation2 + $0x10] sm:$0xff]
        %v802 = vld [vmem:[#allocation2 + $0x18] sm:$0xff]
        %v803 = vld [vmem:[#allocation2 + $0x20] sm:$0xff]
        %v804 = vld [vmem:[#allocation2 + $0x28] sm:$0xff]
        %v805 = vld [vmem:[#allocation2 + $0x30] sm:$0xff]
        %v806 = vld [vmem:[#allocation2 + $0x38] sm:$0xff]
        %v807 = vld [vmem:[#allocation2 + $0x40] sm:$0xff]
        %v808 = vld [vmem:[#allocation2 + $0x48] sm:$0xff]
        %v809 = vld [vmem:[%s204 + $0x4] sm:$0xe]
        %v810 = vld [vmem:[%s204 + $0x8] sm:$0xf]
        %v811 = vld [vmem:[%s204 + $0xc] sm:$0xf]
        %v812 = vld [vmem:[%s204 + $0x10] sm:$0xf]
        %v813 = vld [vmem:[%s204 + $0x14] sm:$0xf]
        %v814 = vld [vmem:[%s204 + $0x18] sm:$0xf]
        %v815 = vld [vmem:[%s204 + $0x1c] sm:$0xf]
        %v816 = vld [vmem:[%s204 + $0x20] sm:$0xf]
        %v817 = vld [vmem:[%s204 + $0x24] sm:$0xf]
        %v818 = vld [vmem:[%s204 + $0x28] sm:$0xf]
        %v819 = vld [vmem:[%s204 + $0x2c] sm:$0x3]
        %s820 = scalar_lea.vmem %s208, 16
        %v821 = vld [vmem:[%s820] sm:$0xf]
        %v833 = vunpack.c.l.b16 %v809
        %v834 = vunpack.c.l.b16 %v810
        %v835 = vunpack.c.l.b16 %v811
        %v836 = vunpack.c.l.b16 %v812
        %v837 = vunpack.c.l.b16 %v813
        %v838 = vunpack.c.l.b16 %v814
        %v839 = vunpack.c.l.b16 %v815
        %v840 = vunpack.c.l.b16 %v816
        %v841 = vunpack.c.l.b16 %v817
        %v842 = vunpack.c.l.b16 %v818
        %v843 = vunpack.c.l.b16 %v819
        %v844 = vpack.c.b16 %v834, %v833
        %v845 = vpack.c.b16 %v836, %v835
        %v846 = vpack.c.b16 %v838, %v837
        %v847 = vpack.c.b16 %v840, %v839
        %v848 = vpack.c.b16 %v842, %v841
        %v849 = vpack.c.b16 %v843, %v843
        %vm850 = vsmask.f32 6400
        %v852 = vshrl.u32 %v844, 16
        %v854 = vrot.slane %v852, 1
        %v855 = vshll.u32 %v844, 16
        %v857 = vrot.slane %v855, 2
        %v858 = vor.u32 %v854, %v857
        %v860 = vshrl.u32 %v845, 16
        %v862 = vrot.slane %v860, 1
        %v863 = vshll.u32 %v845, 16
        %v865 = vrot.slane %v863, 2
        %v866 = vor.u32 %v862, %v865
        %v867 = vsel %vm850, %v858, %v866
        %v869 = vshrl.u32 %v846, 16
        %v871 = vrot.slane %v869, 1
        %v872 = vshll.u32 %v846, 16
        %v874 = vrot.slane %v872, 2
        %v875 = vor.u32 %v871, %v874
        %v876 = vsel %vm850, %v866, %v875
        %v878 = vshrl.u32 %v847, 16
        %v880 = vrot.slane %v878, 1
        %v881 = vshll.u32 %v847, 16
        %v883 = vrot.slane %v881, 2
        %v884 = vor.u32 %v880, %v883
        %v885 = vsel %vm850, %v875, %v884
        %v887 = vshrl.u32 %v848, 16
        %v889 = vrot.slane %v887, 1
        %v890 = vshll.u32 %v848, 16
        %v892 = vrot.slane %v890, 2
        %v893 = vor.u32 %v889, %v892
        %v894 = vsel %vm850, %v884, %v893
        %v896 = vshrl.u32 %v849, 16
        %v898 = vrot.slane %v896, 1
        %v899 = vshll.u32 %v849, 16
        %v901 = vrot.slane %v899, 2
        %v902 = vor.u32 %v898, %v901
        %v903 = vsel %vm850, %v893, %v902
        %v905 = vsel %vm246, %v867, 0
        %v908 = vsel %vm246, %v876, 0
        %v911 = vsel %vm246, %v885, 0
        %v914 = vsel %vm246, %v894, 0
        %v917 = vsel %vm246, %v903, 0
        %v920 = vsel %vm262, %v821, 0
        %922 = vmatpush.bf16.msra.mxu0 0
        %923 = vmatpush.bf16.msra.mxu0 0
        %924 = vmatpush.bf16.msra.mxu0 0
        %925 = vmatpush.bf16.msra.mxu0 0
        %926 = vmatpush.bf16.msra.mxu0 0
        %927 = vmatpush.bf16.msra.mxu0 0
        %928 = vmatpush.bf16.msra.mxu0 0
        %929 = vmatpush.bf16.msra.mxu0 %v920
        %930 = vmatmul.bf16.gmra.mxu0 %v905
        %v931 = vpop.f32.mrf.mxu0
        %v932 = vadd.f32 0.0, %v931
        %v933 = vpop.f32.mrf.mxu0
        %v934 = vadd.f32 0.0, %v933
        %935 = vmatmul.bf16.gmra.mxu0 %v908
        %v936 = vpop.f32.mrf.mxu0
        %v937 = vadd.f32 0.0, %v936
        %v938 = vpop.f32.mrf.mxu0
        %v939 = vadd.f32 0.0, %v938
        %940 = vmatmul.bf16.gmra.mxu0 %v911
        %v941 = vpop.f32.mrf.mxu0
        %v942 = vadd.f32 0.0, %v941
        %v943 = vpop.f32.mrf.mxu0
        %v944 = vadd.f32 0.0, %v943
        %945 = vmatmul.bf16.gmra.mxu0 %v914
        %v946 = vpop.f32.mrf.mxu0
        %v947 = vadd.f32 0.0, %v946
        %v948 = vpop.f32.mrf.mxu0
        %v949 = vadd.f32 0.0, %v948
        %950 = vmatmul.bf16.gmra.mxu0 %v917
        %v951 = vpop.f32.mrf.mxu0
        %v952 = vadd.f32 0.0, %v951
        %v953 = vpop.f32.mrf.mxu0
        %v954 = vadd.f32 0.0, %v953
        %955 = vdwg.mxu0
        %v956 = vadd.f32 %v799, %v932
        %v957 = vadd.f32 %v800, %v934
        %v958 = vadd.f32 %v801, %v937
        %v959 = vadd.f32 %v802, %v939
        %v960 = vadd.f32 %v803, %v942
        %v961 = vadd.f32 %v804, %v944
        %v962 = vadd.f32 %v805, %v947
        %v963 = vadd.f32 %v806, %v949
        %v964 = vadd.f32 %v807, %v952
        %v965 = vadd.f32 %v808, %v954
        %966 = vst [vmem:[#allocation2] sm:$0xff] %v956
        %967 = vst [vmem:[#allocation2 + $0x8] sm:$0xff] %v957
        %968 = vst [vmem:[#allocation2 + $0x10] sm:$0xff] %v958
        %969 = vst [vmem:[#allocation2 + $0x18] sm:$0xff] %v959
        %970 = vst [vmem:[#allocation2 + $0x20] sm:$0xff] %v960
        %971 = vst [vmem:[#allocation2 + $0x28] sm:$0xff] %v961
        %972 = vst [vmem:[#allocation2 + $0x30] sm:$0xff] %v962
        %973 = vst [vmem:[#allocation2 + $0x38] sm:$0xff] %v963
        %974 = vst [vmem:[#allocation2 + $0x40] sm:$0xff] %v964
        %975 = vst [vmem:[#allocation2 + $0x48] sm:$0xff] %v965
        %v976 = vld [vmem:[#allocation2] sm:$0xff]
        %v977 = vld [vmem:[#allocation2 + $0x8] sm:$0xff]
        %v978 = vld [vmem:[#allocation2 + $0x10] sm:$0xff]
        %v979 = vld [vmem:[#allocation2 + $0x18] sm:$0xff]
        %v980 = vld [vmem:[#allocation2 + $0x20] sm:$0xff]
        %v981 = vld [vmem:[#allocation2 + $0x28] sm:$0xff]
        %v982 = vld [vmem:[#allocation2 + $0x30] sm:$0xff]
        %v983 = vld [vmem:[#allocation2 + $0x38] sm:$0xff]
        %v984 = vld [vmem:[#allocation2 + $0x40] sm:$0xff]
        %v985 = vld [vmem:[#allocation2 + $0x48] sm:$0xff]
        %v986 = vld [vmem:[%s204 + $0x4] sm:$0xc]
        %v987 = vld [vmem:[%s204 + $0x8] sm:$0xf]
        %v988 = vld [vmem:[%s204 + $0xc] sm:$0xf]
        %v989 = vld [vmem:[%s204 + $0x10] sm:$0xf]
        %v990 = vld [vmem:[%s204 + $0x14] sm:$0xf]
        %v991 = vld [vmem:[%s204 + $0x18] sm:$0xf]
        %v992 = vld [vmem:[%s204 + $0x1c] sm:$0xf]
        %v993 = vld [vmem:[%s204 + $0x20] sm:$0xf]
        %v994 = vld [vmem:[%s204 + $0x24] sm:$0xf]
        %v995 = vld [vmem:[%s204 + $0x28] sm:$0xf]
        %v996 = vld [vmem:[%s204 + $0x2c] sm:$0x3]
        %s997 = scalar_lea.vmem %s208, 20
        %v998 = vld [vmem:[%s997] sm:$0xf]
        %v1010 = vunpack.c.l.b16 %v986
        %v1011 = vunpack.c.l.b16 %v987
        %v1012 = vunpack.c.l.b16 %v988
        %v1013 = vunpack.c.l.b16 %v989
        %v1014 = vunpack.c.l.b16 %v990
        %v1015 = vunpack.c.l.b16 %v991
        %v1016 = vunpack.c.l.b16 %v992
        %v1017 = vunpack.c.l.b16 %v993
        %v1018 = vunpack.c.l.b16 %v994
        %v1019 = vunpack.c.l.b16 %v995
        %v1020 = vunpack.c.l.b16 %v996
        %v1021 = vpack.c.b16 %v1011, %v1010
        %v1022 = vpack.c.b16 %v1013, %v1012
        %v1023 = vpack.c.b16 %v1015, %v1014
        %v1024 = vpack.c.b16 %v1017, %v1016
        %v1025 = vpack.c.b16 %v1019, %v1018
        %v1026 = vpack.c.b16 %v1020, %v1020
        %vm1027 = vcmask 1045504
        %v1028 = vrot.slane %v1021, 2
        %v1029 = vrot.slane %v1022, 2
        %v1030 = vsel %vm1027, %v1028, %v1029
        %v1031 = vrot.slane %v1023, 2
        %v1032 = vsel %vm1027, %v1029, %v1031
        %v1033 = vrot.slane %v1024, 2
        %v1034 = vsel %vm1027, %v1031, %v1033
        %v1035 = vrot.slane %v1025, 2
        %v1036 = vsel %vm1027, %v1033, %v1035
        %v1037 = vrot.slane %v1026, 2
        %v1038 = vsel %vm1027, %v1035, %v1037
        %v1040 = vsel %vm246, %v1030, 0
        %v1043 = vsel %vm246, %v1032, 0
        %v1046 = vsel %vm246, %v1034, 0
        %v1049 = vsel %vm246, %v1036, 0
        %v1052 = vsel %vm246, %v1038, 0
        %v1055 = vsel %vm262, %v998, 0
        %1057 = vmatpush.bf16.msra.mxu0 0
        %1058 = vmatpush.bf16.msra.mxu0 0
        %1059 = vmatpush.bf16.msra.mxu0 0
        %1060 = vmatpush.bf16.msra.mxu0 0
        %1061 = vmatpush.bf16.msra.mxu0 0
        %1062 = vmatpush.bf16.msra.mxu0 0
        %1063 = vmatpush.bf16.msra.mxu0 0
        %1064 = vmatpush.bf16.msra.mxu0 %v1055
        %1065 = vmatmul.bf16.gmra.mxu0 %v1040
        %v1066 = vpop.f32.mrf.mxu0
        %v1067 = vadd.f32 0.0, %v1066
        %v1068 = vpop.f32.mrf.mxu0
        %v1069 = vadd.f32 0.0, %v1068
        %1070 = vmatmul.bf16.gmra.mxu0 %v1043
        %v1071 = vpop.f32.mrf.mxu0
        %v1072 = vadd.f32 0.0, %v1071
        %v1073 = vpop.f32.mrf.mxu0
        %v1074 = vadd.f32 0.0, %v1073
        %1075 = vmatmul.bf16.gmra.mxu0 %v1046
        %v1076 = vpop.f32.mrf.mxu0
        %v1077 = vadd.f32 0.0, %v1076
        %v1078 = vpop.f32.mrf.mxu0
        %v1079 = vadd.f32 0.0, %v1078
        %1080 = vmatmul.bf16.gmra.mxu0 %v1049
        %v1081 = vpop.f32.mrf.mxu0
        %v1082 = vadd.f32 0.0, %v1081
        %v1083 = vpop.f32.mrf.mxu0
        %v1084 = vadd.f32 0.0, %v1083
        %1085 = vmatmul.bf16.gmra.mxu0 %v1052
        %v1086 = vpop.f32.mrf.mxu0
        %v1087 = vadd.f32 0.0, %v1086
        %v1088 = vpop.f32.mrf.mxu0
        %v1089 = vadd.f32 0.0, %v1088
        %1090 = vdwg.mxu0
        %v1091 = vadd.f32 %v976, %v1067
        %v1092 = vadd.f32 %v977, %v1069
        %v1093 = vadd.f32 %v978, %v1072
        %v1094 = vadd.f32 %v979, %v1074
        %v1095 = vadd.f32 %v980, %v1077
        %v1096 = vadd.f32 %v981, %v1079
        %v1097 = vadd.f32 %v982, %v1082
        %v1098 = vadd.f32 %v983, %v1084
        %v1099 = vadd.f32 %v984, %v1087
        %v1100 = vadd.f32 %v985, %v1089
        %1101 = vst [vmem:[#allocation2] sm:$0xff] %v1091
        %1102 = vst [vmem:[#allocation2 + $0x8] sm:$0xff] %v1092
        %1103 = vst [vmem:[#allocation2 + $0x10] sm:$0xff] %v1093
        %1104 = vst [vmem:[#allocation2 + $0x18] sm:$0xff] %v1094
        %1105 = vst [vmem:[#allocation2 + $0x20] sm:$0xff] %v1095
        %1106 = vst [vmem:[#allocation2 + $0x28] sm:$0xff] %v1096
        %1107 = vst [vmem:[#allocation2 + $0x30] sm:$0xff] %v1097
        %1108 = vst [vmem:[#allocation2 + $0x38] sm:$0xff] %v1098
        %1109 = vst [vmem:[#allocation2 + $0x40] sm:$0xff] %v1099
        %1110 = vst [vmem:[#allocation2 + $0x48] sm:$0xff] %v1100
        %v1111 = vld [vmem:[#allocation2] sm:$0xff]
        %v1112 = vld [vmem:[#allocation2 + $0x8] sm:$0xff]
        %v1113 = vld [vmem:[#allocation2 + $0x10] sm:$0xff]
        %v1114 = vld [vmem:[#allocation2 + $0x18] sm:$0xff]
        %v1115 = vld [vmem:[#allocation2 + $0x20] sm:$0xff]
        %v1116 = vld [vmem:[#allocation2 + $0x28] sm:$0xff]
        %v1117 = vld [vmem:[#allocation2 + $0x30] sm:$0xff]
        %v1118 = vld [vmem:[#allocation2 + $0x38] sm:$0xff]
        %v1119 = vld [vmem:[#allocation2 + $0x40] sm:$0xff]
        %v1120 = vld [vmem:[#allocation2 + $0x48] sm:$0xff]
        %v1121 = vld [vmem:[%s204 + $0x8] sm:$0xc]
        %v1122 = vld [vmem:[%s204 + $0xc] sm:$0xf]
        %v1123 = vld [vmem:[%s204 + $0x10] sm:$0xf]
        %v1124 = vld [vmem:[%s204 + $0x14] sm:$0xf]
        %v1125 = vld [vmem:[%s204 + $0x18] sm:$0xf]
        %v1126 = vld [vmem:[%s204 + $0x1c] sm:$0xf]
        %v1127 = vld [vmem:[%s204 + $0x20] sm:$0xf]
        %v1128 = vld [vmem:[%s204 + $0x24] sm:$0xf]
        %v1129 = vld [vmem:[%s204 + $0x28] sm:$0xf]
        %v1130 = vld [vmem:[%s204 + $0x2c] sm:$0xf]
        %v1131 = vld [vmem:[%s204 + $0x30] sm:$0x3]
        %s1132 = scalar_lea.vmem %s208, 24
        %v1133 = vld [vmem:[%s1132] sm:$0xf]
        %v1145 = vunpack.c.l.b16 %v1121
        %v1146 = vunpack.c.l.b16 %v1122
        %v1147 = vunpack.c.l.b16 %v1123
        %v1148 = vunpack.c.l.b16 %v1124
        %v1149 = vunpack.c.l.b16 %v1125
        %v1150 = vunpack.c.l.b16 %v1126
        %v1151 = vunpack.c.l.b16 %v1127
        %v1152 = vunpack.c.l.b16 %v1128
        %v1153 = vunpack.c.l.b16 %v1129
        %v1154 = vunpack.c.l.b16 %v1130
        %v1155 = vunpack.c.l.b16 %v1131
        %v1156 = vpack.c.b16 %v1146, %v1145
        %v1157 = vpack.c.b16 %v1148, %v1147
        %v1158 = vpack.c.b16 %v1150, %v1149
        %v1159 = vpack.c.b16 %v1152, %v1151
        %v1160 = vpack.c.b16 %v1154, %v1153
        %v1161 = vpack.c.b16 %v1155, %v1155
        %v1162 = vrot.slane %v1156, 2
        %v1163 = vrot.slane %v1157, 2
        %v1164 = vsel %vm1027, %v1162, %v1163
        %v1165 = vrot.slane %v1158, 2
        %v1166 = vsel %vm1027, %v1163, %v1165
        %v1167 = vrot.slane %v1159, 2
        %v1168 = vsel %vm1027, %v1165, %v1167
        %v1169 = vrot.slane %v1160, 2
        %v1170 = vsel %vm1027, %v1167, %v1169
        %v1171 = vrot.slane %v1161, 2
        %v1172 = vsel %vm1027, %v1169, %v1171
        %v1174 = vsel %vm246, %v1164, 0
        %v1177 = vsel %vm246, %v1166, 0
        %v1180 = vsel %vm246, %v1168, 0
        %v1183 = vsel %vm246, %v1170, 0
        %v1186 = vsel %vm246, %v1172, 0
        %v1189 = vsel %vm262, %v1133, 0
        %1191 = vmatpush.bf16.msra.mxu0 0
        %1192 = vmatpush.bf16.msra.mxu0 0
        %1193 = vmatpush.bf16.msra.mxu0 0
        %1194 = vmatpush.bf16.msra.mxu0 0
        %1195 = vmatpush.bf16.msra.mxu0 0
        %1196 = vmatpush.bf16.msra.mxu0 0
        %1197 = vmatpush.bf16.msra.mxu0 0
        %1198 = vmatpush.bf16.msra.mxu0 %v1189
        %1199 = vmatmul.bf16.gmra.mxu0 %v1174
        %v1200 = vpop.f32.mrf.mxu0
        %v1201 = vadd.f32 0.0, %v1200
        %v1202 = vpop.f32.mrf.mxu0
        %v1203 = vadd.f32 0.0, %v1202
        %1204 = vmatmul.bf16.gmra.mxu0 %v1177
        %v1205 = vpop.f32.mrf.mxu0
        %v1206 = vadd.f32 0.0, %v1205
        %v1207 = vpop.f32.mrf.mxu0
        %v1208 = vadd.f32 0.0, %v1207
        %1209 = vmatmul.bf16.gmra.mxu0 %v1180
        %v1210 = vpop.f32.mrf.mxu0
        %v1211 = vadd.f32 0.0, %v1210
        %v1212 = vpop.f32.mrf.mxu0
        %v1213 = vadd.f32 0.0, %v1212
        %1214 = vmatmul.bf16.gmra.mxu0 %v1183
        %v1215 = vpop.f32.mrf.mxu0
        %v1216 = vadd.f32 0.0, %v1215
        %v1217 = vpop.f32.mrf.mxu0
        %v1218 = vadd.f32 0.0, %v1217
        %1219 = vmatmul.bf16.gmra.mxu0 %v1186
        %v1220 = vpop.f32.mrf.mxu0
        %v1221 = vadd.f32 0.0, %v1220
        %v1222 = vpop.f32.mrf.mxu0
        %v1223 = vadd.f32 0.0, %v1222
        %1224 = vdwg.mxu0
        %v1225 = vadd.f32 %v1111, %v1201
        %v1226 = vadd.f32 %v1112, %v1203
        %v1227 = vadd.f32 %v1113, %v1206
        %v1228 = vadd.f32 %v1114, %v1208
        %v1229 = vadd.f32 %v1115, %v1211
        %v1230 = vadd.f32 %v1116, %v1213
        %v1231 = vadd.f32 %v1117, %v1216
        %v1232 = vadd.f32 %v1118, %v1218
        %v1233 = vadd.f32 %v1119, %v1221
        %v1234 = vadd.f32 %v1120, %v1223
        %1235 = vst [vmem:[#allocation2] sm:$0xff] %v1225
        %1236 = vst [vmem:[#allocation2 + $0x8] sm:$0xff] %v1226
        %1237 = vst [vmem:[#allocation2 + $0x10] sm:$0xff] %v1227
        %1238 = vst [vmem:[#allocation2 + $0x18] sm:$0xff] %v1228
        %1239 = vst [vmem:[#allocation2 + $0x20] sm:$0xff] %v1229
        %1240 = vst [vmem:[#allocation2 + $0x28] sm:$0xff] %v1230
        %1241 = vst [vmem:[#allocation2 + $0x30] sm:$0xff] %v1231
        %1242 = vst [vmem:[#allocation2 + $0x38] sm:$0xff] %v1232
        %1243 = vst [vmem:[#allocation2 + $0x40] sm:$0xff] %v1233
        %1244 = vst [vmem:[#allocation2 + $0x48] sm:$0xff] %v1234
        %v1245 = vld [vmem:[#allocation2] sm:$0xff]
        %v1246 = vld [vmem:[#allocation2 + $0x8] sm:$0xff]
        %v1247 = vld [vmem:[#allocation2 + $0x10] sm:$0xff]
        %v1248 = vld [vmem:[#allocation2 + $0x18] sm:$0xff]
        %v1249 = vld [vmem:[#allocation2 + $0x20] sm:$0xff]
        %v1250 = vld [vmem:[#allocation2 + $0x28] sm:$0xff]
        %v1251 = vld [vmem:[#allocation2 + $0x30] sm:$0xff]
        %v1252 = vld [vmem:[#allocation2 + $0x38] sm:$0xff]
        %v1253 = vld [vmem:[#allocation2 + $0x40] sm:$0xff]
        %v1254 = vld [vmem:[#allocation2 + $0x48] sm:$0xff]
        %v1255 = vld [vmem:[%s204 + $0x8] sm:$0xc]
        %v1256 = vld [vmem:[%s204 + $0xc] sm:$0xf]
        %v1257 = vld [vmem:[%s204 + $0x10] sm:$0xf]
        %v1258 = vld [vmem:[%s204 + $0x14] sm:$0xf]
        %v1259 = vld [vmem:[%s204 + $0x18] sm:$0xf]
        %v1260 = vld [vmem:[%s204 + $0x1c] sm:$0xf]
        %v1261 = vld [vmem:[%s204 + $0x20] sm:$0xf]
        %v1262 = vld [vmem:[%s204 + $0x24] sm:$0xf]
        %v1263 = vld [vmem:[%s204 + $0x28] sm:$0xf]
        %v1264 = vld [vmem:[%s204 + $0x2c] sm:$0xf]
        %v1265 = vld [vmem:[%s204 + $0x30] sm:$0x7]
        %s1266 = scalar_lea.vmem %s208, 28
        %v1267 = vld [vmem:[%s1266] sm:$0xf]
        %v1279 = vunpack.c.l.b16 %v1255
        %v1280 = vunpack.c.l.b16 %v1256
        %v1281 = vunpack.c.l.b16 %v1257
        %v1282 = vunpack.c.l.b16 %v1258
        %v1283 = vunpack.c.l.b16 %v1259
        %v1284 = vunpack.c.l.b16 %v1260
        %v1285 = vunpack.c.l.b16 %v1261
        %v1286 = vunpack.c.l.b16 %v1262
        %v1287 = vunpack.c.l.b16 %v1263
        %v1288 = vunpack.c.l.b16 %v1264
        %v1289 = vunpack.c.l.b16 %v1265
        %v1290 = vpack.c.b16 %v1280, %v1279
        %v1291 = vpack.c.b16 %v1282, %v1281
        %v1292 = vpack.c.b16 %v1284, %v1283
        %v1293 = vpack.c.b16 %v1286, %v1285
        %v1294 = vpack.c.b16 %v1288, %v1287
        %v1295 = vpack.c.b16 %v1289, %v1289
        %vm1296 = vsmask.f32 5376
        %v1298 = vshrl.u32 %v1290, 16
        %v1300 = vrot.slane %v1298, 2
        %v1301 = vshll.u32 %v1290, 16
        %v1303 = vrot.slane %v1301, 3
        %v1304 = vor.u32 %v1300, %v1303
        %v1306 = vshrl.u32 %v1291, 16
        %v1308 = vrot.slane %v1306, 2
        %v1309 = vshll.u32 %v1291, 16
        %v1311 = vrot.slane %v1309, 3
        %v1312 = vor.u32 %v1308, %v1311
        %v1313 = vsel %vm1296, %v1304, %v1312
        %v1315 = vshrl.u32 %v1292, 16
        %v1317 = vrot.slane %v1315, 2
        %v1318 = vshll.u32 %v1292, 16
        %v1320 = vrot.slane %v1318, 3
        %v1321 = vor.u32 %v1317, %v1320
        %v1322 = vsel %vm1296, %v1312, %v1321
        %v1324 = vshrl.u32 %v1293, 16
        %v1326 = vrot.slane %v1324, 2
        %v1327 = vshll.u32 %v1293, 16
        %v1329 = vrot.slane %v1327, 3
        %v1330 = vor.u32 %v1326, %v1329
        %v1331 = vsel %vm1296, %v1321, %v1330
        %v1333 = vshrl.u32 %v1294, 16
        %v1335 = vrot.slane %v1333, 2
        %v1336 = vshll.u32 %v1294, 16
        %v1338 = vrot.slane %v1336, 3
        %v1339 = vor.u32 %v1335, %v1338
        %v1340 = vsel %vm1296, %v1330, %v1339
        %v1342 = vshrl.u32 %v1295, 16
        %v1344 = vrot.slane %v1342, 2
        %v1345 = vshll.u32 %v1295, 16
        %v1347 = vrot.slane %v1345, 3
        %v1348 = vor.u32 %v1344, %v1347
        %v1349 = vsel %vm1296, %v1339, %v1348
        %v1351 = vsel %vm246, %v1313, 0
        %v1354 = vsel %vm246, %v1322, 0
        %v1357 = vsel %vm246, %v1331, 0
        %v1360 = vsel %vm246, %v1340, 0
        %v1363 = vsel %vm246, %v1349, 0
        %v1366 = vsel %vm262, %v1267, 0
        %1368 = vmatpush.bf16.msra.mxu0 0
        %1369 = vmatpush.bf16.msra.mxu0 0
        %1370 = vmatpush.bf16.msra.mxu0 0
        %1371 = vmatpush.bf16.msra.mxu0 0
        %1372 = vmatpush.bf16.msra.mxu0 0
        %1373 = vmatpush.bf16.msra.mxu0 0
        %1374 = vmatpush.bf16.msra.mxu0 0
        %1375 = vmatpush.bf16.msra.mxu0 %v1366
        %1376 = vmatmul.bf16.gmra.mxu0 %v1351
        %v1377 = vpop.f32.mrf.mxu0
        %v1378 = vadd.f32 0.0, %v1377
        %v1379 = vpop.f32.mrf.mxu0
        %v1380 = vadd.f32 0.0, %v1379
        %1381 = vmatmul.bf16.gmra.mxu0 %v1354
        %v1382 = vpop.f32.mrf.mxu0
        %v1383 = vadd.f32 0.0, %v1382
        %v1384 = vpop.f32.mrf.mxu0
        %v1385 = vadd.f32 0.0, %v1384
        %1386 = vmatmul.bf16.gmra.mxu0 %v1357
        %v1387 = vpop.f32.mrf.mxu0
        %v1388 = vadd.f32 0.0, %v1387
        %v1389 = vpop.f32.mrf.mxu0
        %v1390 = vadd.f32 0.0, %v1389
        %1391 = vmatmul.bf16.gmra.mxu0 %v1360
        %v1392 = vpop.f32.mrf.mxu0
        %v1393 = vadd.f32 0.0, %v1392
        %v1394 = vpop.f32.mrf.mxu0
        %v1395 = vadd.f32 0.0, %v1394
        %1396 = vmatmul.bf16.gmra.mxu0 %v1363
        %v1397 = vpop.f32.mrf.mxu0
        %v1398 = vadd.f32 0.0, %v1397
        %v1399 = vpop.f32.mrf.mxu0
        %v1400 = vadd.f32 0.0, %v1399
        %1401 = vdwg.mxu0
        %v1402 = vadd.f32 %v1245, %v1378
        %v1403 = vadd.f32 %v1246, %v1380
        %v1404 = vadd.f32 %v1247, %v1383
        %v1405 = vadd.f32 %v1248, %v1385
        %v1406 = vadd.f32 %v1249, %v1388
        %v1407 = vadd.f32 %v1250, %v1390
        %v1408 = vadd.f32 %v1251, %v1393
        %v1409 = vadd.f32 %v1252, %v1395
        %v1410 = vadd.f32 %v1253, %v1398
        %v1411 = vadd.f32 %v1254, %v1400
        %1412 = vst [vmem:[#allocation2] sm:$0xff] %v1402
        %1413 = vst [vmem:[#allocation2 + $0x8] sm:$0xff] %v1403
        %1414 = vst [vmem:[#allocation2 + $0x10] sm:$0xff] %v1404
        %1415 = vst [vmem:[#allocation2 + $0x18] sm:$0xff] %v1405
        %1416 = vst [vmem:[#allocation2 + $0x20] sm:$0xff] %v1406
        %1417 = vst [vmem:[#allocation2 + $0x28] sm:$0xff] %v1407
        %1418 = vst [vmem:[#allocation2 + $0x30] sm:$0xff] %v1408
        %1419 = vst [vmem:[#allocation2 + $0x38] sm:$0xff] %v1409
        %1420 = vst [vmem:[#allocation2 + $0x40] sm:$0xff] %v1410
        %1421 = vst [vmem:[#allocation2 + $0x48] sm:$0xff] %v1411
        %v1422 = vld [vmem:[#allocation2] sm:$0xff]
        %v1423 = vld [vmem:[#allocation2 + $0x8] sm:$0xff]
        %v1424 = vld [vmem:[#allocation2 + $0x10] sm:$0xff]
        %v1425 = vld [vmem:[#allocation2 + $0x18] sm:$0xff]
        %v1426 = vld [vmem:[#allocation2 + $0x20] sm:$0xff]
        %v1427 = vld [vmem:[#allocation2 + $0x28] sm:$0xff]
        %v1428 = vld [vmem:[#allocation2 + $0x30] sm:$0xff]
        %v1429 = vld [vmem:[#allocation2 + $0x38] sm:$0xff]
        %v1430 = vld [vmem:[#allocation2 + $0x40] sm:$0xff]
        %v1431 = vld [vmem:[#allocation2 + $0x48] sm:$0xff]
        %v1432 = vld [vmem:[%s204 + $0x8] sm:$0x8]
        %v1433 = vld [vmem:[%s204 + $0xc] sm:$0xf]
        %v1434 = vld [vmem:[%s204 + $0x10] sm:$0xf]
        %v1435 = vld [vmem:[%s204 + $0x14] sm:$0xf]
        %v1436 = vld [vmem:[%s204 + $0x18] sm:$0xf]
        %v1437 = vld [vmem:[%s204 + $0x1c] sm:$0xf]
        %v1438 = vld [vmem:[%s204 + $0x20] sm:$0xf]
        %v1439 = vld [vmem:[%s204 + $0x24] sm:$0xf]
        %v1440 = vld [vmem:[%s204 + $0x28] sm:$0xf]
        %v1441 = vld [vmem:[%s204 + $0x2c] sm:$0xf]
        %v1442 = vld [vmem:[%s204 + $0x30] sm:$0x7]
        %s1443 = scalar_lea.vmem %s208, 32
        %v1444 = vld [vmem:[%s1443] sm:$0xf]
        %v1456 = vunpack.c.l.b16 %v1432
        %v1457 = vunpack.c.l.b16 %v1433
        %v1458 = vunpack.c.l.b16 %v1434
        %v1459 = vunpack.c.l.b16 %v1435
        %v1460 = vunpack.c.l.b16 %v1436
        %v1461 = vunpack.c.l.b16 %v1437
        %v1462 = vunpack.c.l.b16 %v1438
        %v1463 = vunpack.c.l.b16 %v1439
        %v1464 = vunpack.c.l.b16 %v1440
        %v1465 = vunpack.c.l.b16 %v1441
        %v1466 = vunpack.c.l.b16 %v1442
        %v1467 = vpack.c.b16 %v1457, %v1456
        %v1468 = vpack.c.b16 %v1459, %v1458
        %v1469 = vpack.c.b16 %v1461, %v1460
        %v1470 = vpack.c.b16 %v1463, %v1462
        %v1471 = vpack.c.b16 %v1465, %v1464
        %v1472 = vpack.c.b16 %v1466, %v1466
        %vm1473 = vcmask 1044480
        %v1474 = vrot.slane %v1467, 3
        %v1475 = vrot.slane %v1468, 3
        %v1476 = vsel %vm1473, %v1474, %v1475
        %v1477 = vrot.slane %v1469, 3
        %v1478 = vsel %vm1473, %v1475, %v1477
        %v1479 = vrot.slane %v1470, 3
        %v1480 = vsel %vm1473, %v1477, %v1479
        %v1481 = vrot.slane %v1471, 3
        %v1482 = vsel %vm1473, %v1479, %v1481
        %v1483 = vrot.slane %v1472, 3
        %v1484 = vsel %vm1473, %v1481, %v1483
        %v1486 = vsel %vm246, %v1476, 0
        %v1489 = vsel %vm246, %v1478, 0
        %v1492 = vsel %vm246, %v1480, 0
        %v1495 = vsel %vm246, %v1482, 0
        %v1498 = vsel %vm246, %v1484, 0
        %v1501 = vsel %vm262, %v1444, 0
        %1503 = vmatpush.bf16.msra.mxu0 0
        %1504 = vmatpush.bf16.msra.mxu0 0
        %1505 = vmatpush.bf16.msra.mxu0 0
        %1506 = vmatpush.bf16.msra.mxu0 0
        %1507 = vmatpush.bf16.msra.mxu0 0
        %1508 = vmatpush.bf16.msra.mxu0 0
        %1509 = vmatpush.bf16.msra.mxu0 0
        %1510 = vmatpush.bf16.msra.mxu0 %v1501
        %1511 = vmatmul.bf16.gmra.mxu0 %v1486
        %v1512 = vpop.f32.mrf.mxu0
        %v1513 = vadd.f32 0.0, %v1512
        %v1514 = vpop.f32.mrf.mxu0
        %v1515 = vadd.f32 0.0, %v1514
        %1516 = vmatmul.bf16.gmra.mxu0 %v1489
        %v1517 = vpop.f32.mrf.mxu0
        %v1518 = vadd.f32 0.0, %v1517
        %v1519 = vpop.f32.mrf.mxu0
        %v1520 = vadd.f32 0.0, %v1519
        %1521 = vmatmul.bf16.gmra.mxu0 %v1492
        %v1522 = vpop.f32.mrf.mxu0
        %v1523 = vadd.f32 0.0, %v1522
        %v1524 = vpop.f32.mrf.mxu0
        %v1525 = vadd.f32 0.0, %v1524
        %1526 = vmatmul.bf16.gmra.mxu0 %v1495
        %v1527 = vpop.f32.mrf.mxu0
        %v1528 = vadd.f32 0.0, %v1527
        %v1529 = vpop.f32.mrf.mxu0
        %v1530 = vadd.f32 0.0, %v1529
        %1531 = vmatmul.bf16.gmra.mxu0 %v1498
        %v1532 = vpop.f32.mrf.mxu0
        %v1533 = vadd.f32 0.0, %v1532
        %v1534 = vpop.f32.mrf.mxu0
        %v1535 = vadd.f32 0.0, %v1534
        %1536 = vdwg.mxu0
        %v1537 = vadd.f32 %v1422, %v1513
        %v1538 = vadd.f32 %v1423, %v1515
        %v1539 = vadd.f32 %v1424, %v1518
        %v1540 = vadd.f32 %v1425, %v1520
        %v1541 = vadd.f32 %v1426, %v1523
        %v1542 = vadd.f32 %v1427, %v1525
        %v1543 = vadd.f32 %v1428, %v1528
        %v1544 = vadd.f32 %v1429, %v1530
        %v1545 = vadd.f32 %v1430, %v1533
        %v1546 = vadd.f32 %v1431, %v1535
        %1547 = vst [vmem:[#allocation2] sm:$0xff] %v1537
        %1548 = vst [vmem:[#allocation2 + $0x8] sm:$0xff] %v1538
        %1549 = vst [vmem:[#allocation2 + $0x10] sm:$0xff] %v1539
        %1550 = vst [vmem:[#allocation2 + $0x18] sm:$0xff] %v1540
        %1551 = vst [vmem:[#allocation2 + $0x20] sm:$0xff] %v1541
        %1552 = vst [vmem:[#allocation2 + $0x28] sm:$0xff] %v1542
        %1553 = vst [vmem:[#allocation2 + $0x30] sm:$0xff] %v1543
        %1554 = vst [vmem:[#allocation2 + $0x38] sm:$0xff] %v1544
        %1555 = vst [vmem:[#allocation2 + $0x40] sm:$0xff] %v1545
        %1556 = vst [vmem:[#allocation2 + $0x48] sm:$0xff] %v1546
        // Predicated region
        $region41: #{tpu_custom_call.1} parent=31 // pred_check
          %p1557 = pneg %p300
        $region42: #{tpu_custom_call.1} parent=31 // pred_check_branch
          %1559 = sbr.rel (%p1557) target = $region44
        $region43: #{tpu_custom_call.1} parent=31 // pred_region
          %v1560 = vld [vmem:[#allocation2] sm:$0xff]
          %v1561 = vld [vmem:[#allocation2 + $0x8] sm:$0xff]
          %v1562 = vld [vmem:[#allocation2 + $0x10] sm:$0xff]
          %v1563 = vld [vmem:[#allocation2 + $0x18] sm:$0xff]
          %v1564 = vld [vmem:[#allocation2 + $0x20] sm:$0xff]
          %v1565 = vld [vmem:[#allocation2 + $0x28] sm:$0xff]
          %v1566 = vld [vmem:[#allocation2 + $0x30] sm:$0xff]
          %v1567 = vld [vmem:[#allocation2 + $0x38] sm:$0xff]
          %v1568 = vld [vmem:[#allocation2 + $0x40] sm:$0xff]
          %v1569 = vld [vmem:[#allocation2 + $0x48] sm:$0xff]
          %v1570 = vpack.c.bf16 %v1560, %v1560
          %v1571 = vpack.c.bf16 %v1561, %v1561
          %v1572 = vpack.c.bf16 %v1562, %v1562
          %v1573 = vpack.c.bf16 %v1563, %v1563
          %v1574 = vpack.c.bf16 %v1564, %v1564
          %v1575 = vpack.c.bf16 %v1565, %v1565
          %v1576 = vpack.c.bf16 %v1566, %v1566
          %v1577 = vpack.c.bf16 %v1567, %v1567
          %v1578 = vpack.c.bf16 %v1568, %v1568
          %v1579 = vpack.c.bf16 %v1569, %v1569
          %1580 = vst [vmem:[%s196] sm:$0xf] %v1570
          %1581 = vst [vmem:[%s196 + $0x4] sm:$0xf] %v1571
          %1582 = vst [vmem:[%s196 + $0x8] sm:$0xf] %v1572
          %1583 = vst [vmem:[%s196 + $0xc] sm:$0xf] %v1573
          %1584 = vst [vmem:[%s196 + $0x10] sm:$0xf] %v1574
          %1585 = vst [vmem:[%s196 + $0x14] sm:$0xf] %v1575
          %1586 = vst [vmem:[%s196 + $0x18] sm:$0xf] %v1576
          %1587 = vst [vmem:[%s196 + $0x1c] sm:$0xf] %v1577
          %1588 = vst [vmem:[%s196 + $0x20] sm:$0xf] %v1578
          %1589 = vst [vmem:[%s196 + $0x24] sm:$0xf] %v1579
        $region44: #{tpu_custom_call.1} parent=31 // pred_fallthru
          _
        %s1590 = sand.u32 %s112, 1
        %s1591 = scalar_lea.sflag [#allocation4], %s1590
        %s1592 = sand.u32 %s112, 1
        %s1593 = smul.addr %s1592, 40
        %s1594 = scalar_lea.vmem [#allocation3], %s1593
        // Predicated region
        $region45: #{tpu_custom_call.1} parent=31 // pred_check
          %p1595 = pneg %p122
        $region46: #{tpu_custom_call.1} parent=31 // pred_check_branch
          %1597 = sbr.rel (%p1595) target = $region48
        $region47: #{tpu_custom_call.1} parent=31 // pred_region
          %1599 = vsyncadd %s1591, 0
          %s1600 = smul.addr %s21, 10
          %s1601 = smul.addr %s1600, 4
          %s1602 = scalar_lea.hbm %s3, %s1601
          %s1603 = sshll.u32 %s1594, 4
          %s1604 = int_to_ptr.vmem [resolvable:$true] %s1603
          %s1605 = sshll.u32 %s1602, 4
          %s1606 = int_to_ptr.hbm [resolvable:$true] %s1605
          %1611 = dma.vmem_to_hbm [thread:$0]  %s1604, 640, %s1606, %s1591, 64, 64, 4
        $region48: #{tpu_custom_call.1} parent=31 // pred_fallthru
          _
      $region32: #{tpu_custom_call.1} parent=5 // pred_fallthru
        _
      %p1612 = scmp.le.s32.totalorder 2, %s12
      // Predicated region
      $region49: #{tpu_custom_call.1} parent=5 // pred_check
        %p1613 = pneg %p1612
      $region50: #{tpu_custom_call.1} parent=5 // pred_check_branch
        %1615 = sbr.rel (%p1613) target = $region52
      $region51: #{tpu_custom_call.1} parent=5 // pred_region
        %s1616 = ssub.s32 %s12, 2
        // Predicated region
        $region53: #{tpu_custom_call.1} parent=51 // pred_check
          %p1617 = pneg %p128
        $region54: #{tpu_custom_call.1} parent=51 // pred_check_branch
          %1619 = sbr.rel (%p1617) target = $region56
        $region55: #{tpu_custom_call.1} parent=51 // pred_region
          %s1620 = sand.u32 %s113, 1
          %s1621 = scalar_lea.sflag [#allocation4], %s1620
          %s1622 = sand.u32 %s113, 1
          %s1623 = smul.addr %s1622, 40
          %s1624 = scalar_lea.vmem [#allocation3], %s1623
          %1626 = dma.done %s1621, 640
        $region56: #{tpu_custom_call.1} parent=51 // pred_fallthru
          _
      $region52: #{tpu_custom_call.1} parent=5 // pred_fallthru
        _
    $region6: #{tpu_custom_call.1} parent=1 // loop_footer
      %s16 = sadd.s32 1, %s12
    $region7: #{tpu_custom_call.1} parent=1 // loop_footer_branch
      %11 = sbr.rel target = $region3
    $region8: #{tpu_custom_call.1} parent=1 // loop_exit
      _
    %1627 = vsyncpa [#allocation4], 1
    %s1628 = scalar_lea.sflag [#allocation4], 1
    %1629 = vsyncpa %s1628, 1

</llo_original>
